<compile_context>
chip_gen: v5e
topology: v5e:2x2
jax: 0.10.0
libtpu: 0.0.40
codegen_flags: <defaults>
</compile_context>

<pallas_src>
import math
from functools import partial

import jax
import jax.numpy as jnp
import numpy as np
from jax.experimental import pallas as pl
from jax.experimental.pallas import tpu as pltpu

# ---- scaled-down but structurally identical hyper-parameters -----------------
TOKEN_DIM = 128                  # token_dim (768/1280 in the real module)
TIME_EMBED_DIM = 4 * TOKEN_DIM   # time_embed_dim = token_dim * 4
HEADS = 8                        # Attentions(n_heads=8)
D_HEAD = 64                      # Attentions(d_head=64)
INNER = HEADS * D_HEAD           # CrossAttention inner dim
B = 2                            # batch
N = 8                            # tokenized_text sequence length
NUM_VECTORS_PER_TOKEN = 1

# ---- constant-slab layout: all (1, X) vectors packed into one VMEM operand ----
_SLAB_LAYOUT = (
    ("b_te1", TIME_EMBED_DIM),     # time_embed Linear-1 bias
    ("b_te2", TIME_EMBED_DIM),     # time_embed Linear-2 bias
    ("b_el_init", TOKEN_DIM),      # emb_layers bias + initial_embeddings[placeholder]
    ("b_attn", TOKEN_DIM),         # folded bo2 @ Wn + bn
    ("freqs", TOKEN_DIM),          # sinusoid frequencies (duplicated halves)
    ("cos_mask", TOKEN_DIM),       # 1.0 where cos(), 0.0 where sin()
)
SLAB_OFF, SLAB_W = {}, {}
_off = 0
for _name, _w in _SLAB_LAYOUT:
    SLAB_OFF[_name] = _off
    SLAB_W[_name] = _w
    _off += _w
SLAB_LEN = _off          # 2*512 + 4*128 = 1536 (all offsets lane-tile aligned)


def embedding_manager_kernel(
    ts_ref,             # (B, 1)    f32  VMEM   timestep
    tok_ref,            # (B, N)    i32  SMEM   tokenized_text
    emb_text_hbm_ref,   # (B, N, D) f32  ANY    embedded_text (aliased to output)
    token_ref,          # (1,)      i32  SMEM   placeholder token id
    slab_ref,           # (1, SLAB_LEN) f32 VMEM  packed constants
    w_te1_ref,          # (D, 4D)   bf16 VMEM   time_embed Linear 1
    w_te2_ref,          # (4D, 4D)  bf16 VMEM   time_embed Linear 2
    w_el_ref,           # (4D, D)   bf16 VMEM   emb_layers Linear
    w_attn_ref,         # (D, D)    bf16 VMEM   folded Wv2 @ Wo2 @ Wn
    out_hbm_ref,        # (B, N, D) f32  ANY    output (same HBM buffer as input)
    pe_vmem,            # (B, 1, D) f32  VMEM scratch: placeholder embedding rows
    copy_sem,           # (B,) DMA semaphores
):
    f32 = jnp.float32
    bf16 = jnp.bfloat16
    del emb_text_hbm_ref  # aliased to out_hbm_ref; never read in-kernel

    b = ts_ref.shape[0]
    n_tok = tok_ref.shape[1]

    def const(name):
        off = SLAB_OFF[name]
        return slab_ref[:, off:off + SLAB_W[name]]          # static slice -> (1, W)

    # ---- scalar placeholder search FIRST (unrolled; overlaps the MXU chain and
    # keeps all SMEM reads ahead of any DMA .wait()).  Keeps the LAST match per
    # row; the max_vectors_per_token == 1 path assumes <= 1 occurrence per row.
    token = token_ref[0]
    cols = []
    for row in range(b):
        col = jnp.int32(-1)
        for j in range(n_tok):                               # static unroll (N=8)
            col = jnp.where(tok_ref[row, j] == token, jnp.int32(j), col)
        cols.append(col)

    # ---- timestep_embedding (sinusoidal); freqs / cos-mask precomputed on host
    args = ts_ref[...] * const("freqs")                      # (B, D)
    t_emb = jnp.where(const("cos_mask") > 0.5, jnp.cos(args), jnp.sin(args))

    def silu(x):
        return x * jax.nn.sigmoid(x)

    def dense(x, w_ref, bias):
        # bf16 operands (MXU-native), f32 accumulation, f32 bias add.
        return jnp.dot(x.astype(bf16), w_ref[...], preferred_element_type=f32) + bias

    # ---- time_embed: Linear -> SiLU -> Linear --------------------------------
    emb = dense(silu(dense(t_emb, w_te1_ref, const("b_te1"))), w_te2_ref, const("b_te2"))

    # ---- emb_layers: SiLU -> Linear; bias + initial_embedding pre-folded ------
    h = dense(silu(emb), w_el_ref, const("b_el_init"))                 # (B, D)

    # ---- Attentions with sequence length 1 ------------------------------------
    # softmax over a single key is exactly 1: attn1 only feeds attn2's
    # (irrelevant) query, attn2 reduces to ctx @ Wv2 @ Wo2 + bo2, and the
    # trailing net Linear folds in too: one matmul with Wv2@Wo2@Wn (offline).
    placeholder_embedding = dense(h, w_attn_ref, const("b_attn"))      # (B, D)

    # Stage rows in VMEM so they can be DMA-scattered into the aliased output.
    pe_vmem[...] = placeholder_embedding[:, None, :]

    # ---- scatter: embedded_text[row, col] = placeholder_embedding[row] --------
    # Output aliases the input HBM buffer, so only matched (1, D) rows move.
    def row_copy(row, col):
        return pltpu.make_async_copy(
            pe_vmem.at[pl.ds(row, 1)],                       # (1, 1, D) VMEM
            out_hbm_ref.at[pl.ds(row, 1), pl.ds(col, 1)],    # (1, 1, D) HBM
            copy_sem.at[row],
        )

    # start all matched-row DMAs ...
    for row in range(b):
        @pl.when(cols[row] >= 0)
        def _(row=row):
            row_copy(row, cols[row]).start()

    # ... then wait on all of them (overlapped small HBM writes).
    for row in range(b):
        @pl.when(cols[row] >= 0)
        def _(row=row):
            row_copy(row, cols[row]).wait()


def _padded_vmem_bytes(shape, dtype):
    """Conservative VMEM footprint of one operand ((sublane, lane) tile padding)."""
    itemsize = jnp.dtype(dtype).itemsize
    shape = tuple(int(s) for s in shape)
    if len(shape) == 0:
        shape = (1, 1)
    elif len(shape) == 1:
        shape = (1, shape[0])
    sub_mult = 8 * max(1, 4 // itemsize)       # f32/i32 -> 8, bf16 -> 16
    lead = int(np.prod(shape[:-2])) if len(shape) > 2 else 1
    sub = -(-shape[-2] // sub_mult) * sub_mult
    lane = -(-shape[-1] // 128) * 128
    return lead * sub * lane * itemsize


def embedding_manager_forward(tokenized_text, embedded_text, timestep, kparams):
    if embedded_text.dtype != jnp.float32:
        # Casting here would silently defeat input_output_aliases (extra full
        # (B, N, D) HBM copy); require the caller to pass f32 + donate it.
        raise ValueError("embedded_text must be float32 so the output can alias it in place")

    b, n = tokenized_text.shape
    d = embedded_text.shape[-1]

    vmem = pl.BlockSpec(memory_space=pltpu.MemorySpace.VMEM)
    smem = pl.BlockSpec(memory_space=pltpu.MemorySpace.SMEM)
    anym = pl.BlockSpec(memory_space=pl.ANY)

    args = (
        timestep.astype(jnp.float32).reshape(b, 1),   # 0
        tokenized_text.astype(jnp.int32),             # 1
        embedded_text,                                # 2  (aliased to output 0, donated)
        kparams["placeholder_token"],                 # 3
        kparams["slab"],                              # 4
        kparams["w_te1"],                             # 5
        kparams["w_te2"],                             # 6
        kparams["w_el"],                              # 7
        kparams["w_attn"],                            # 8
    )
    in_specs = [vmem, smem, anym, smem, vmem, vmem, vmem, vmem, vmem]

    # VMEM footprint (HBM-resident embedded_text excluded) + scratch + headroom.
    vmem_operands = [args[0], args[4], args[5], args[6], args[7], args[8]]
    footprint = sum(_padded_vmem_bytes(a.shape, a.dtype) for a in vmem_operands)
    footprint += _padded_vmem_bytes((b, 1, d), jnp.float32)       # pe_vmem scratch
    vmem_limit = max(8 * 1024 * 1024, 2 * footprint)              # generous headroom

    return pl.pallas_call(
        embedding_manager_kernel,
        out_shape=jax.ShapeDtypeStruct((b, n, d), jnp.float32),
        in_specs=in_specs,
        out_specs=anym,
        scratch_shapes=[
            pltpu.VMEM((b, 1, d), jnp.float32),
            pltpu.SemaphoreType.DMA((b,)),
        ],
        input_output_aliases={2: 0},   # embedded_text buffer is updated in place
        compiler_params=pltpu.CompilerParams(vmem_limit_bytes=int(vmem_limit)),
    )(*args)


# Donate embedded_text so the pallas alias is a real in-place update (no hidden copy).
embedding_manager_forward_jit = partial(jax.jit, donate_argnums=(1,))(embedding_manager_forward)


# ---- pure-JAX reference (mirrors the PyTorch forward, full attention, f32) ----
def reference_forward(tokenized_text, embedded_text, timestep, params):
    silu = lambda x: x * jax.nn.sigmoid(x)
    half = TOKEN_DIM // 2
    freqs = jnp.exp(-math.log(10000.0) * jnp.arange(half, dtype=jnp.float32) / half)
    args = timestep.reshape(B, 1).astype(jnp.float32) * freqs[None, :]
    t_emb = jnp.concatenate([jnp.cos(args), jnp.sin(args)], axis=-1)       # (B, D)

    emb = silu(t_emb @ params["w_te1"] + params["b_te1"]) @ params["w_te2"] + params["b_te2"]
    e = silu(emb) @ params["w_el"] + params["b_el"]
    h = e[:, None, :] + params["init_emb"][None]                            # (B, 1, D)

    def cross_attention(x, ctx, wq, wk, wv, wo, bo):
        q = (x @ wq).reshape(B, -1, HEADS, D_HEAD).transpose(0, 2, 1, 3)
        k = (ctx @ wk).reshape(B, -1, HEADS, D_HEAD).transpose(0, 2, 1, 3)
        v = (ctx @ wv).reshape(B, -1, HEADS, D_HEAD).transpose(0, 2, 1, 3)
        sim = jnp.einsum("bhid,bhjd->bhij", q, k) * (D_HEAD ** -0.5)
        a = jax.nn.softmax(sim, axis=-1)
        o = jnp.einsum("bhij,bhjd->bhid", a, v)
        o = o.transpose(0, 2, 1, 3).reshape(B, -1, INNER)
        return o @ wo + bo

    x1 = cross_attention(h, h, params["wq1"], params["wk1"], params["wv1"],
                         params["wo1"], params["bo1"])
    x2 = cross_attention(x1, h, params["wq2"], params["wk2"], params["wv2"],
                         params["wo2"], params["bo2"])
    pe = (x2 @ params["wn"] + params["bn"]).reshape(B, TOKEN_DIM)

    mask = tokenized_text == params["placeholder_token"][0]
    return jnp.where(mask[:, :, None], pe[:, None, :], embedded_text)


def make_params(key):
    keys = jax.random.split(key, 24)

    def w(k, shp, s=0.02):
        v = (s * jax.random.normal(k, shp)).astype(jnp.float32)
        # snap weights to bf16-representable values so the bf16 kernel weights and
        # the f32 reference use identical numbers (biases stay full f32 in both).
        return v.astype(jnp.bfloat16).astype(jnp.float32)

    def bvec(k, shp, s=0.01):
        return (s * jax.random.normal(k, shp)).astype(jnp.float32)

    D, T, I = TOKEN_DIM, TIME_EMBED_DIM, INNER
    params = {
        "w_te1": w(keys[0], (D, T)), "b_te1": bvec(keys[1], (1, T)),
        "w_te2": w(keys[2], (T, T)), "b_te2": bvec(keys[3], (1, T)),
        "w_el":  w(keys[4], (T, D)), "b_el":  bvec(keys[5], (1, D)),
        "wq1": w(keys[6], (D, I)), "wk1": w(keys[7], (D, I)), "wv1": w(keys[8], (D, I)),
        "wo1": w(keys[9], (I, D)), "bo1": bvec(keys[10], (1, D)),
        "wq2": w(keys[11], (D, I)), "wk2": w(keys[12], (D, I)), "wv2": w(keys[13], (D, I)),
        "wo2": w(keys[14], (I, D)), "bo2": bvec(keys[15], (1, D)),
        "wn": w(keys[16], (D, D)), "bn": bvec(keys[17], (1, D)),
        # initial_embeddings[placeholder]: (num_vectors_per_token, token_dim)
        "init_emb": (0.1 * jax.random.normal(keys[18], (NUM_VECTORS_PER_TOKEN, D))
                     ).astype(jnp.float32),
        "placeholder_token": jnp.array([265], dtype=jnp.int32),
    }
    return params, keys


def make_kernel_params(p):
    """Derive the compact kernel parameter set from the module's f32 parameters."""
    D = TOKEN_DIM
    half = D // 2

    freqs = jnp.exp(-math.log(10000.0) * jnp.arange(half, dtype=jnp.float32) / half)
    freqs_full = jnp.concatenate([freqs, freqs]).reshape(1, D)
    cos_mask = jnp.concatenate([jnp.ones((half,), jnp.float32),
                                jnp.zeros((half,), jnp.float32)]).reshape(1, D)

    # attn1 is dead (its output only feeds attn2's query; softmax over 1 key == 1);
    # attn2's value path + the trailing net Linear fold into a single (D, D) matmul.
    w_attn = p["wv2"] @ p["wo2"] @ p["wn"]                 # f32 fold, cast to bf16 below
    b_attn = p["bo2"] @ p["wn"] + p["bn"]                  # stays f32 in the slab
    b_el_init = p["b_el"] + p["init_emb"].reshape(1, D)    # bias + initial embedding fold

    pieces = {
        "b_te1": p["b_te1"], "b_te2": p["b_te2"],
        "b_el_init": b_el_init, "b_attn": b_attn,
        "freqs": freqs_full, "cos_mask": cos_mask,
    }
    slab = jnp.concatenate([pieces[name].astype(jnp.float32)
                            for name, _ in _SLAB_LAYOUT], axis=1)
    assert slab.shape == (1, SLAB_LEN)

    return {
        "placeholder_token": p["placeholder_token"].reshape(1).astype(jnp.int32),
        "slab": slab,
        "w_te1": p["w_te1"].astype(jnp.bfloat16),
        "w_te2": p["w_te2"].astype(jnp.bfloat16),
        "w_el": p["w_el"].astype(jnp.bfloat16),
        "w_attn": w_attn.astype(jnp.bfloat16),
    }


if __name__ == "__main__":
    params, keys = make_params(jax.random.PRNGKey(0))
    kparams = make_kernel_params(params)

    # tokenized_text: exactly one placeholder token per row (as the torch code
    # assumes for the max_vectors_per_token == 1 path).
    tok = jax.random.randint(keys[19], (B, N), 1000, 2000, dtype=jnp.int32)
    tok = tok.at[0, 3].set(265).at[1, 5].set(265)
    embedded_text = jax.random.normal(keys[20], (B, N, TOKEN_DIM), dtype=jnp.float32)
    timestep = jnp.array([17.0, 431.0], dtype=jnp.float32)

    # reference first (faithful full-attention f32 mirror of the torch forward);
    # block on it before the kernel consumes (donates) the embedded_text buffer.
    ref = jax.block_until_ready(reference_forward(tok, embedded_text, timestep, params))

    out = embedding_manager_forward_jit(tok, embedded_text, timestep, kparams)
    out = jax.block_until_ready(out)

    np.testing.assert_allclose(np.asarray(out), np.asarray(ref), rtol=5e-3, atol=5e-3)
    print("KERNEL_OK")
</pallas_src>

<mosaic_0001>
module attributes {stable_mosaic.version = 11 : i64} {
  func.func @embedding_manager_kernel(%arg0: memref<2x1xf32, #tpu.memory_space<vmem>>, %arg1: memref<2x8xi32, #tpu.memory_space<smem>>, %arg2: memref<2x8x128xf32, #tpu.memory_space<any>>, %arg3: memref<1xi32, #tpu.memory_space<smem>>, %arg4: memref<1x1536xf32, #tpu.memory_space<vmem>>, %arg5: memref<128x512xbf16, #tpu.memory_space<vmem>>, %arg6: memref<512x512xbf16, #tpu.memory_space<vmem>>, %arg7: memref<512x128xbf16, #tpu.memory_space<vmem>>, %arg8: memref<128x128xbf16, #tpu.memory_space<vmem>>, %arg9: memref<2x8x128xf32, #tpu.memory_space<any>>, %arg10: memref<2x1x128xf32, #tpu.memory_space<vmem>>, %arg11: memref<2x!tpu.dma_semaphore, #tpu.memory_space<semaphore_mem>>) attributes {dimension_semantics = [], scalar_prefetch = 0 : i64, scratch_operands = 2 : i64, tpu.core_type = #tpu.core_type<tc>} {
    %c0 = arith.constant 0 : index
    %0 = memref.load %arg3[%c0] : memref<1xi32, #tpu.memory_space<smem>>
    %c0_0 = arith.constant 0 : index
    %c0_1 = arith.constant 0 : index
    %1 = memref.load %arg1[%c0_0, %c0_1] : memref<2x8xi32, #tpu.memory_space<smem>>
    %2 = arith.cmpi eq, %1, %0 : i32
    %c0_i32 = arith.constant 0 : i32
    %c-1_i32 = arith.constant -1 : i32
    %3 = arith.select %2, %c0_i32, %c-1_i32 : i32
    %c0_2 = arith.constant 0 : index
    %c1 = arith.constant 1 : index
    %4 = memref.load %arg1[%c0_2, %c1] : memref<2x8xi32, #tpu.memory_space<smem>>
    %5 = arith.cmpi eq, %4, %0 : i32
    %c1_i32 = arith.constant 1 : i32
    %6 = arith.select %5, %c1_i32, %3 : i32
    %c0_3 = arith.constant 0 : index
    %c2 = arith.constant 2 : index
    %7 = memref.load %arg1[%c0_3, %c2] : memref<2x8xi32, #tpu.memory_space<smem>>
    %8 = arith.cmpi eq, %7, %0 : i32
    %c2_i32 = arith.constant 2 : i32
    %9 = arith.select %8, %c2_i32, %6 : i32
    %c0_4 = arith.constant 0 : index
    %c3 = arith.constant 3 : index
    %10 = memref.load %arg1[%c0_4, %c3] : memref<2x8xi32, #tpu.memory_space<smem>>
    %11 = arith.cmpi eq, %10, %0 : i32
    %c3_i32 = arith.constant 3 : i32
    %12 = arith.select %11, %c3_i32, %9 : i32
    %c0_5 = arith.constant 0 : index
    %c4 = arith.constant 4 : index
    %13 = memref.load %arg1[%c0_5, %c4] : memref<2x8xi32, #tpu.memory_space<smem>>
    %14 = arith.cmpi eq, %13, %0 : i32
    %c4_i32 = arith.constant 4 : i32
    %15 = arith.select %14, %c4_i32, %12 : i32
    %c0_6 = arith.constant 0 : index
    %c5 = arith.constant 5 : index
    %16 = memref.load %arg1[%c0_6, %c5] : memref<2x8xi32, #tpu.memory_space<smem>>
    %17 = arith.cmpi eq, %16, %0 : i32
    %c5_i32 = arith.constant 5 : i32
    %18 = arith.select %17, %c5_i32, %15 : i32
    %c0_7 = arith.constant 0 : index
    %c6 = arith.constant 6 : index
    %19 = memref.load %arg1[%c0_7, %c6] : memref<2x8xi32, #tpu.memory_space<smem>>
    %20 = arith.cmpi eq, %19, %0 : i32
    %c6_i32 = arith.constant 6 : i32
    %21 = arith.select %20, %c6_i32, %18 : i32
    %c0_8 = arith.constant 0 : index
    %c7 = arith.constant 7 : index
    %22 = memref.load %arg1[%c0_8, %c7] : memref<2x8xi32, #tpu.memory_space<smem>>
    %23 = arith.cmpi eq, %22, %0 : i32
    %c7_i32 = arith.constant 7 : i32
    %24 = arith.select %23, %c7_i32, %21 : i32
    %c1_9 = arith.constant 1 : index
    %c0_10 = arith.constant 0 : index
    %25 = memref.load %arg1[%c1_9, %c0_10] : memref<2x8xi32, #tpu.memory_space<smem>>
    %26 = arith.cmpi eq, %25, %0 : i32
    %c0_i32_11 = arith.constant 0 : i32
    %c-1_i32_12 = arith.constant -1 : i32
    %27 = arith.select %26, %c0_i32_11, %c-1_i32_12 : i32
    %c1_13 = arith.constant 1 : index
    %c1_14 = arith.constant 1 : index
    %28 = memref.load %arg1[%c1_13, %c1_14] : memref<2x8xi32, #tpu.memory_space<smem>>
    %29 = arith.cmpi eq, %28, %0 : i32
    %c1_i32_15 = arith.constant 1 : i32
    %30 = arith.select %29, %c1_i32_15, %27 : i32
    %c1_16 = arith.constant 1 : index
    %c2_17 = arith.constant 2 : index
    %31 = memref.load %arg1[%c1_16, %c2_17] : memref<2x8xi32, #tpu.memory_space<smem>>
    %32 = arith.cmpi eq, %31, %0 : i32
    %c2_i32_18 = arith.constant 2 : i32
    %33 = arith.select %32, %c2_i32_18, %30 : i32
    %c1_19 = arith.constant 1 : index
    %c3_20 = arith.constant 3 : index
    %34 = memref.load %arg1[%c1_19, %c3_20] : memref<2x8xi32, #tpu.memory_space<smem>>
    %35 = arith.cmpi eq, %34, %0 : i32
    %c3_i32_21 = arith.constant 3 : i32
    %36 = arith.select %35, %c3_i32_21, %33 : i32
    %c1_22 = arith.constant 1 : index
    %c4_23 = arith.constant 4 : index
    %37 = memref.load %arg1[%c1_22, %c4_23] : memref<2x8xi32, #tpu.memory_space<smem>>
    %38 = arith.cmpi eq, %37, %0 : i32
    %c4_i32_24 = arith.constant 4 : i32
    %39 = arith.select %38, %c4_i32_24, %36 : i32
    %c1_25 = arith.constant 1 : index
    %c5_26 = arith.constant 5 : index
    %40 = memref.load %arg1[%c1_25, %c5_26] : memref<2x8xi32, #tpu.memory_space<smem>>
    %41 = arith.cmpi eq, %40, %0 : i32
    %c5_i32_27 = arith.constant 5 : i32
    %42 = arith.select %41, %c5_i32_27, %39 : i32
    %c1_28 = arith.constant 1 : index
    %c6_29 = arith.constant 6 : index
    %43 = memref.load %arg1[%c1_28, %c6_29] : memref<2x8xi32, #tpu.memory_space<smem>>
    %44 = arith.cmpi eq, %43, %0 : i32
    %c6_i32_30 = arith.constant 6 : i32
    %45 = arith.select %44, %c6_i32_30, %42 : i32
    %c1_31 = arith.constant 1 : index
    %c7_32 = arith.constant 7 : index
    %46 = memref.load %arg1[%c1_31, %c7_32] : memref<2x8xi32, #tpu.memory_space<smem>>
    %47 = arith.cmpi eq, %46, %0 : i32
    %c7_i32_33 = arith.constant 7 : i32
    %48 = arith.select %47, %c7_i32_33, %45 : i32
    %c0_34 = arith.constant 0 : index
    %c0_35 = arith.constant 0 : index
    %49 = vector.load %arg0[%c0_34, %c0_35] : memref<2x1xf32, #tpu.memory_space<vmem>>, vector<2x1xf32>
    %c0_36 = arith.constant 0 : index
    %c1280 = arith.constant 1280 : index
    %50 = vector.load %arg4[%c0_36, %c1280] : memref<1x1536xf32, #tpu.memory_space<vmem>>, vector<1x128xf32>
    %51 = vector.broadcast %49 : vector<2x1xf32> to vector<2x128xf32>
    %52 = vector.broadcast %50 : vector<1x128xf32> to vector<2x128xf32>
    %53 = arith.mulf %51, %52 : vector<2x128xf32>
    %c0_37 = arith.constant 0 : index
    %c1408 = arith.constant 1408 : index
    %54 = vector.load %arg4[%c0_37, %c1408] : memref<1x1536xf32, #tpu.memory_space<vmem>>, vector<1x128xf32>
    %cst = arith.constant 5.000000e-01 : f32
    %55 = vector.broadcast %cst : f32 to vector<1x128xf32>
    %56 = arith.cmpf ogt, %54, %55 : vector<1x128xf32>
    %57 = math.cos %53 : vector<2x128xf32>
    %58 = math.sin %53 : vector<2x128xf32>
    %59 = vector.shape_cast %56 : vector<1x128xi1> to vector<1x128xi1>
    %60 = vector.broadcast %59 : vector<1x128xi1> to vector<2x128xi1>
    %61 = arith.select %60, %57, %58 : vector<2x128xi1>, vector<2x128xf32>
    %c0_38 = arith.constant 0 : index
    %c0_39 = arith.constant 0 : index
    %62 = vector.load %arg4[%c0_38, %c0_39] : memref<1x1536xf32, #tpu.memory_space<vmem>>, vector<1x512xf32>
    %63 = arith.truncf %61 : vector<2x128xf32> to vector<2x128xbf16>
    %c0_40 = arith.constant 0 : index
    %c0_41 = arith.constant 0 : index
    %64 = vector.load %arg5[%c0_40, %c0_41] : memref<128x512xbf16, #tpu.memory_space<vmem>>, vector<128x512xbf16>
    %cst_42 = arith.constant dense<0.000000e+00> : vector<2x512xf32>
    %65 = tpu.matmul %63, %64, %cst_42 {dimension_numbers = #tpu.dot_dimension_numbers<[1], [0], [0], [1], [0, 0, 1, 1], [], []>} : vector<2x128xbf16>, vector<128x512xbf16>, vector<2x512xf32> -> vector<2x512xf32>
    %66 = vector.broadcast %62 : vector<1x512xf32> to vector<2x512xf32>
    %67 = arith.addf %65, %66 : vector<2x512xf32>
    %68 = arith.negf %67 : vector<2x512xf32>
    %69 = math.exp %68 : vector<2x512xf32>
    %cst_43 = arith.constant 1.000000e+00 : f32
    %70 = vector.broadcast %cst_43 : f32 to vector<2x512xf32>
    %71 = arith.addf %70, %69 : vector<2x512xf32>
    %72 = arith.divf %70, %71 : vector<2x512xf32>
    %73 = arith.mulf %67, %72 : vector<2x512xf32>
    %c0_44 = arith.constant 0 : index
    %c512 = arith.constant 512 : index
    %74 = vector.load %arg4[%c0_44, %c512] : memref<1x1536xf32, #tpu.memory_space<vmem>>, vector<1x512xf32>
    %75 = arith.truncf %73 : vector<2x512xf32> to vector<2x512xbf16>
    %c0_45 = arith.constant 0 : index
    %c0_46 = arith.constant 0 : index
    %76 = vector.load %arg6[%c0_45, %c0_46] : memref<512x512xbf16, #tpu.memory_space<vmem>>, vector<512x512xbf16>
    %cst_47 = arith.constant dense<0.000000e+00> : vector<2x512xf32>
    %77 = tpu.matmul %75, %76, %cst_47 {dimension_numbers = #tpu.dot_dimension_numbers<[1], [0], [0], [1], [0, 0, 1, 1], [], []>} : vector<2x512xbf16>, vector<512x512xbf16>, vector<2x512xf32> -> vector<2x512xf32>
    %78 = vector.broadcast %74 : vector<1x512xf32> to vector<2x512xf32>
    %79 = arith.addf %77, %78 : vector<2x512xf32>
    %80 = arith.negf %79 : vector<2x512xf32>
    %81 = math.exp %80 : vector<2x512xf32>
    %cst_48 = arith.constant 1.000000e+00 : f32
    %82 = vector.broadcast %cst_48 : f32 to vector<2x512xf32>
    %83 = arith.addf %82, %81 : vector<2x512xf32>
    %84 = arith.divf %82, %83 : vector<2x512xf32>
    %85 = arith.mulf %79, %84 : vector<2x512xf32>
    %c0_49 = arith.constant 0 : index
    %c1024 = arith.constant 1024 : index
    %86 = vector.load %arg4[%c0_49, %c1024] : memref<1x1536xf32, #tpu.memory_space<vmem>>, vector<1x128xf32>
    %87 = arith.truncf %85 : vector<2x512xf32> to vector<2x512xbf16>
    %c0_50 = arith.constant 0 : index
    %c0_51 = arith.constant 0 : index
    %88 = vector.load %arg7[%c0_50, %c0_51] : memref<512x128xbf16, #tpu.memory_space<vmem>>, vector<512x128xbf16>
    %cst_52 = arith.constant dense<0.000000e+00> : vector<2x128xf32>
    %89 = tpu.matmul %87, %88, %cst_52 {dimension_numbers = #tpu.dot_dimension_numbers<[1], [0], [0], [1], [0, 0, 1, 1], [], []>} : vector<2x512xbf16>, vector<512x128xbf16>, vector<2x128xf32> -> vector<2x128xf32>
    %90 = vector.broadcast %86 : vector<1x128xf32> to vector<2x128xf32>
    %91 = arith.addf %89, %90 : vector<2x128xf32>
    %c0_53 = arith.constant 0 : index
    %c1152 = arith.constant 1152 : index
    %92 = vector.load %arg4[%c0_53, %c1152] : memref<1x1536xf32, #tpu.memory_space<vmem>>, vector<1x128xf32>
    %93 = arith.truncf %91 : vector<2x128xf32> to vector<2x128xbf16>
    %c0_54 = arith.constant 0 : index
    %c0_55 = arith.constant 0 : index
    %94 = vector.load %arg8[%c0_54, %c0_55] : memref<128x128xbf16, #tpu.memory_space<vmem>>, vector<128x128xbf16>
    %cst_56 = arith.constant dense<0.000000e+00> : vector<2x128xf32>
    %95 = tpu.matmul %93, %94, %cst_56 {dimension_numbers = #tpu.dot_dimension_numbers<[1], [0], [0], [1], [0, 0, 1, 1], [], []>} : vector<2x128xbf16>, vector<128x128xbf16>, vector<2x128xf32> -> vector<2x128xf32>
    %96 = vector.broadcast %92 : vector<1x128xf32> to vector<2x128xf32>
    %97 = arith.addf %95, %96 : vector<2x128xf32>
    %98 = vector.shape_cast %97 : vector<2x128xf32> to vector<2x1x128xf32>
    %c0_57 = arith.constant 0 : index
    %c0_58 = arith.constant 0 : index
    %c0_59 = arith.constant 0 : index
    %99 = vector.load %arg10[%c0_57, %c0_58, %c0_59] : memref<2x1x128xf32, #tpu.memory_space<vmem>>, vector<2x1x128xf32>
    tpu.vector_store %arg10[%c0_57, %c0_58, %c0_59], %98 {strides = array<i32>} : memref<2x1x128xf32, #tpu.memory_space<vmem>>, vector<2x1x128xf32>,
    %c0_i32_60 = arith.constant 0 : i32
    %100 = arith.cmpi sge, %24, %c0_i32_60 : i32
    %101 = arith.extui %100 : i1 to i32
    %c0_i32_61 = arith.constant 0 : i32
    %102 = arith.cmpi ne, %101, %c0_i32_61 : i32
    scf.if %102 {
      %c0_i32_68 = arith.constant 0 : i32
      %c0_i32_69 = arith.constant 0 : i32
      %c0_i32_70 = arith.constant 0 : i32
      %c0_i32_71 = arith.constant 0 : i32
      %112 = tpu.memref_slice %arg10[%c0_i32_69, %c0_i32_70, %c0_i32_71] : memref<2x1x128xf32, #tpu.memory_space<vmem>> -> memref<1x1x128xf32, #tpu.memory_space<vmem>>
      %c0_i32_72 = arith.constant 0 : i32
      %c0_i32_73 = arith.constant 0 : i32
      %113 = tpu.memref_slice %arg9[%c0_i32_72, %24, %c0_i32_73] : memref<2x8x128xf32, #tpu.memory_space<any>> -> memref<1x1x128xf32, #tpu.memory_space<any>>
      %114 = tpu.memref_slice %arg11[%c0_i32_68] : memref<2x!tpu.dma_semaphore, #tpu.memory_space<semaphore_mem>> -> memref<1x!tpu.dma_semaphore, #tpu.memory_space<semaphore_mem>>
      %115 = tpu.memref_squeeze %114 : memref<1x!tpu.dma_semaphore, #tpu.memory_space<semaphore_mem>> -> memref<!tpu.dma_semaphore, #tpu.memory_space<semaphore_mem>>
      tpu.enqueue_dma source(%112 : memref<1x1x128xf32, #tpu.memory_space<vmem>>) target(%113 : memref<1x1x128xf32, #tpu.memory_space<any>>) target_semaphore(%115 : memref<!tpu.dma_semaphore, #tpu.memory_space<semaphore_mem>>)
    } else {
    }
    %c0_i32_62 = arith.constant 0 : i32
    %103 = arith.cmpi sge, %48, %c0_i32_62 : i32
    %104 = arith.extui %103 : i1 to i32
    %c0_i32_63 = arith.constant 0 : i32
    %105 = arith.cmpi ne, %104, %c0_i32_63 : i32
    scf.if %105 {
      %c1_i32_68 = arith.constant 1 : i32
      %c1_i32_69 = arith.constant 1 : i32
      %c0_i32_70 = arith.constant 0 : i32
      %c0_i32_71 = arith.constant 0 : i32
      %112 = tpu.memref_slice %arg10[%c1_i32_69, %c0_i32_70, %c0_i32_71] : memref<2x1x128xf32, #tpu.memory_space<vmem>> -> memref<1x1x128xf32, #tpu.memory_space<vmem>>
      %c1_i32_72 = arith.constant 1 : i32
      %c0_i32_73 = arith.constant 0 : i32
      %113 = tpu.memref_slice %arg9[%c1_i32_72, %48, %c0_i32_73] : memref<2x8x128xf32, #tpu.memory_space<any>> -> memref<1x1x128xf32, #tpu.memory_space<any>>
      %114 = tpu.memref_slice %arg11[%c1_i32_68] : memref<2x!tpu.dma_semaphore, #tpu.memory_space<semaphore_mem>> -> memref<1x!tpu.dma_semaphore, #tpu.memory_space<semaphore_mem>>
      %115 = tpu.memref_squeeze %114 : memref<1x!tpu.dma_semaphore, #tpu.memory_space<semaphore_mem>> -> memref<!tpu.dma_semaphore, #tpu.memory_space<semaphore_mem>>
      tpu.enqueue_dma source(%112 : memref<1x1x128xf32, #tpu.memory_space<vmem>>) target(%113 : memref<1x1x128xf32, #tpu.memory_space<any>>) target_semaphore(%115 : memref<!tpu.dma_semaphore, #tpu.memory_space<semaphore_mem>>)
    } else {
    }
    %c0_i32_64 = arith.constant 0 : i32
    %106 = arith.cmpi sge, %24, %c0_i32_64 : i32
    %107 = arith.extui %106 : i1 to i32
    %c0_i32_65 = arith.constant 0 : i32
    %108 = arith.cmpi ne, %107, %c0_i32_65 : i32
    scf.if %108 {
      %c0_i32_68 = arith.constant 0 : i32
      %c0_i32_69 = arith.constant 0 : i32
      %c0_i32_70 = arith.constant 0 : i32
      %c0_i32_71 = arith.constant 0 : i32
      %112 = tpu.memref_slice %arg10[%c0_i32_69, %c0_i32_70, %c0_i32_71] : memref<2x1x128xf32, #tpu.memory_space<vmem>> -> memref<1x1x128xf32, #tpu.memory_space<vmem>>
      %c0_i32_72 = arith.constant 0 : i32
      %c0_i32_73 = arith.constant 0 : i32
      %113 = tpu.memref_slice %arg9[%c0_i32_72, %24, %c0_i32_73] : memref<2x8x128xf32, #tpu.memory_space<any>> -> memref<1x1x128xf32, #tpu.memory_space<any>>
      %114 = tpu.memref_slice %arg11[%c0_i32_68] : memref<2x!tpu.dma_semaphore, #tpu.memory_space<semaphore_mem>> -> memref<1x!tpu.dma_semaphore, #tpu.memory_space<semaphore_mem>>
      %115 = tpu.memref_squeeze %114 : memref<1x!tpu.dma_semaphore, #tpu.memory_space<semaphore_mem>> -> memref<!tpu.dma_semaphore, #tpu.memory_space<semaphore_mem>>
      tpu.wait_dma2 semaphore(%115 : memref<!tpu.dma_semaphore, #tpu.memory_space<semaphore_mem>>) src(%112 : memref<1x1x128xf32, #tpu.memory_space<vmem>>) dst(%113 : memref<1x1x128xf32, #tpu.memory_space<any>>)
    } else {
    }
    %c0_i32_66 = arith.constant 0 : i32
    %109 = arith.cmpi sge, %48, %c0_i32_66 : i32
    %110 = arith.extui %109 : i1 to i32
    %c0_i32_67 = arith.constant 0 : i32
    %111 = arith.cmpi ne, %110, %c0_i32_67 : i32
    scf.if %111 {
      %c1_i32_68 = arith.constant 1 : i32
      %c1_i32_69 = arith.constant 1 : i32
      %c0_i32_70 = arith.constant 0 : i32
      %c0_i32_71 = arith.constant 0 : i32
      %112 = tpu.memref_slice %arg10[%c1_i32_69, %c0_i32_70, %c0_i32_71] : memref<2x1x128xf32, #tpu.memory_space<vmem>> -> memref<1x1x128xf32, #tpu.memory_space<vmem>>
      %c1_i32_72 = arith.constant 1 : i32
      %c0_i32_73 = arith.constant 0 : i32
      %113 = tpu.memref_slice %arg9[%c1_i32_72, %48, %c0_i32_73] : memref<2x8x128xf32, #tpu.memory_space<any>> -> memref<1x1x128xf32, #tpu.memory_space<any>>
      %114 = tpu.memref_slice %arg11[%c1_i32_68] : memref<2x!tpu.dma_semaphore, #tpu.memory_space<semaphore_mem>> -> memref<1x!tpu.dma_semaphore, #tpu.memory_space<semaphore_mem>>
      %115 = tpu.memref_squeeze %114 : memref<1x!tpu.dma_semaphore, #tpu.memory_space<semaphore_mem>> -> memref<!tpu.dma_semaphore, #tpu.memory_space<semaphore_mem>>
      tpu.wait_dma2 semaphore(%115 : memref<!tpu.dma_semaphore, #tpu.memory_space<semaphore_mem>>) src(%112 : memref<1x1x128xf32, #tpu.memory_space<vmem>>) dst(%113 : memref<1x1x128xf32, #tpu.memory_space<any>>)
    } else {
    }
    return
  }
}

</mosaic_0001>

<llo_original>
// kernel: embedding_manager_forward.1
$region0: #{embedding_manager_forward.1}
  #allocation0 [shape = 'u32[]', space=smem, size = 0x4, offset = 0x4, fixed_abs, tag = 'smem constant byte address 0x4 - core index']
  #allocation1 [shape = 'u32[72,128]{1,0:T(1,128)}', space=vmem, size = 0x9000, scoped, tag = 'internal scratch']
  #allocation2 [shape = 'f32[2,1,128]{2,1,0:T(1,128)}', space=vmem, size = 0x400, scoped, tag = 'scratch operand']
  #allocation3 [shape = 's32[2]{0}', space=sflag, size = 0x8, scoped, tag = 'scratch operand']
  #allocation4 [shape = 's32[1]{0:T(128)S(6)}', space=smem, size = 0x200, scoped, tag = 'scoped memory for embedding_manager_forward.1']
  #allocation15 [shape = 's32[]', space=sflag, size = 0x4, offset = 0, fixed_abs, tag = 'sflag constant byte address 0x0 - dummy sync flag']
  #allocation16 [shape = 's32[]', space=sflag, size = 0x4, offset = 0, fixed_abs, tag = 'sflag constant byte address 0x0 - dummy sync flag']
  #allocation17 [shape = 'u32[]', space=smem, size = 0x4, offset = 0x44, fixed_abs, tag = 'smem constant byte address 0x44 - assertion arg 0']
  #allocation18 [shape = 'u32[]', space=smem, size = 0x4, offset = 0x48, fixed_abs, tag = 'smem constant byte address 0x48 - assertion arg 1']
  #allocation19 [shape = 's32[]', space=sflag, size = 0x4, offset = 0, fixed_abs, tag = 'sflag constant byte address 0x0 - dummy sync flag']
  #allocation20 [shape = 's32[]', space=sflag, size = 0x4, offset = 0, fixed_abs, tag = 'sflag constant byte address 0x0 - dummy sync flag']
  %s0 = inlined_call_operand.vmem [shape: f32[2,1], index: 0, kind: input, shape index: {}]
  %s1 = inlined_call_operand.vmem [shape: s32[2,8], index: 1, kind: input, shape index: {}]
  %s2 = inlined_call_operand.hbm [shape: f32[2,8,128], index: 2, kind: input, shape index: {}, may-alias: {2,9}]
  %s3 = inlined_call_operand.<no memory space> [shape: s32[1], index: 3, kind: input, shape index: {}]
  %s4 = inlined_call_operand.hbm [shape: f32[1,1536], index: 4, kind: input, shape index: {}]
  %s5 = inlined_call_operand.hbm [shape: bf16[128,512], index: 5, kind: input, shape index: {}]
  %s6 = inlined_call_operand.hbm [shape: bf16[512,512], index: 6, kind: input, shape index: {}]
  %s7 = inlined_call_operand.hbm [shape: bf16[512,128], index: 7, kind: input, shape index: {}]
  %s8 = inlined_call_operand.hbm [shape: bf16[128,128], index: 8, kind: input, shape index: {}]
  %s9 = inlined_call_operand.hbm [shape: f32[2,8,128], index: 9, kind: output, shape index: {}, may-alias: {2,9}]
  %s10 = sld [smem:[#allocation0]]
  $region82: #{embedding_manager_forward.1} parent=0
    _
  %s12 = ssub.s32 1, %s10
  %s13 = scalar_select 0, %s12, %s10
  %14 = sst [smem:[#allocation4]] %s3
  $region1: #{embedding_manager_forward.1} parent=0
    #allocation5 [shape = 'u8[1024]{0}', space=smem, size = 0x400, scoped, tag = 'input window, operand 1, single buffered']
    #allocation6 [shape = 's32[1]{0}', space=sflag, size = 0x4, scoped, tag = 'scoped memory for embedding_manager_forward.1']
    #allocation7 [shape = 's32[1]{0}', space=sflag, size = 0x4, scoped, tag = 'scoped memory for embedding_manager_forward.1']
    #allocation8 [shape = 'u8[6144]{0}', space=vmem, size = 0x1800, scoped, tag = 'input window, operand 4, single buffered']
    #allocation9 [shape = 'u8[131072]{0}', space=vmem, size = 0x20000, scoped, tag = 'input window, operand 5, single buffered']
    #allocation10 [shape = 's32[1]{0}', space=sflag, size = 0x4, scoped, tag = 'scoped memory for embedding_manager_forward.1']
    #allocation11 [shape = 'u8[524288]{0}', space=vmem, size = 0x80000, scoped, tag = 'input window, operand 6, single buffered']
    #allocation12 [shape = 'u8[131072]{0}', space=vmem, size = 0x20000, scoped, tag = 'input window, operand 7, single buffered']
    #allocation13 [shape = 's32[1]{0}', space=sflag, size = 0x4, scoped, tag = 'scoped memory for embedding_manager_forward.1']
    #allocation14 [shape = 'u8[32768]{0}', space=vmem, size = 0x8000, scoped, tag = 'input window, operand 8, single buffered']
    %15 = vsyncpa [#allocation7], 0
    %16 = vsyncpa [#allocation6], 0
    %17 = vsyncpa [#allocation10], 0
    %18 = vsyncpa [#allocation13], 0
    // Predicated region
    $region2: #{embedding_manager_forward.1} parent=1 // pred_check
      _
    $region3: #{embedding_manager_forward.1} parent=1 // pred_check_branch
      %20 = sbr.rel (0) target = $region5
    $region4: #{embedding_manager_forward.1} parent=1 // pred_region
      _
    $region5: #{embedding_manager_forward.1} parent=1 // pred_fallthru
      _
    // Predicated region
    $region6: #{embedding_manager_forward.1} parent=1 // pred_check
      _
    $region7: #{embedding_manager_forward.1} parent=1 // pred_check_branch
      %22 = sbr.rel (0) target = $region9
    $region8: #{embedding_manager_forward.1} parent=1 // pred_region
      %24 = vsyncadd [#allocation7], 0
      %s26 = sshll.u32 %s1, 4
      %s27 = int_to_ptr.vmem [resolvable:$true] %s26
      %29 = dma.vmem_to_smem %s27, 32, [#allocation5], [#allocation7]
    $region9: #{embedding_manager_forward.1} parent=1 // pred_fallthru
      _
    // Predicated region
    $region10: #{embedding_manager_forward.1} parent=1 // pred_check
      _
    $region11: #{embedding_manager_forward.1} parent=1 // pred_check_branch
      %31 = sbr.rel (0) target = $region13
    $region12: #{embedding_manager_forward.1} parent=1 // pred_region
      _
    $region13: #{embedding_manager_forward.1} parent=1 // pred_fallthru
      _
    // Predicated region
    $region14: #{embedding_manager_forward.1} parent=1 // pred_check
      _
    $region15: #{embedding_manager_forward.1} parent=1 // pred_check_branch
      %33 = sbr.rel (0) target = $region17
    $region16: #{embedding_manager_forward.1} parent=1 // pred_region
      %35 = vsyncadd [#allocation6], 0
      %s37 = sshll.u32 %s4, 4
      %s38 = int_to_ptr.hbm [resolvable:$true] %s37
      %s39 = sshll.u32 [#allocation8], 4
      %s40 = int_to_ptr.vmem [resolvable:$true] %s39
      %42 = dma.hbm_to_vmem [thread:$0]  %s38, 192, %s40, [#allocation6]
    $region17: #{embedding_manager_forward.1} parent=1 // pred_fallthru
      _
    // Predicated region
    $region18: #{embedding_manager_forward.1} parent=1 // pred_check
      _
    $region19: #{embedding_manager_forward.1} parent=1 // pred_check_branch
      %44 = sbr.rel (0) target = $region21
    $region20: #{embedding_manager_forward.1} parent=1 // pred_region
      %46 = vsyncadd [#allocation10], 0
      %s47 = sshll.u32 %s5, 4
      %s48 = int_to_ptr.hbm [resolvable:$true] %s47
      %s49 = sshll.u32 [#allocation9], 4
      %s50 = int_to_ptr.vmem [resolvable:$true] %s49
      %55 = dma.hbm_to_vmem [thread:$0]  %s48, 4096, %s50, [#allocation10], 256, 256, 16
    $region21: #{embedding_manager_forward.1} parent=1 // pred_fallthru
      _
    // Predicated region
    $region22: #{embedding_manager_forward.1} parent=1 // pred_check
      _
    $region23: #{embedding_manager_forward.1} parent=1 // pred_check_branch
      %57 = sbr.rel (0) target = $region25
    $region24: #{embedding_manager_forward.1} parent=1 // pred_region
      %59 = vsyncadd [#allocation10], 0
      %s60 = sshll.u32 %s6, 4
      %s61 = int_to_ptr.hbm [resolvable:$true] %s60
      %s62 = sshll.u32 [#allocation11], 4
      %s63 = int_to_ptr.vmem [resolvable:$true] %s62
      %68 = dma.hbm_to_vmem [thread:$0]  %s61, 16384, %s63, [#allocation10], 256, 256, 16
    $region25: #{embedding_manager_forward.1} parent=1 // pred_fallthru
      _
    // Predicated region
    $region26: #{embedding_manager_forward.1} parent=1 // pred_check
      _
    $region27: #{embedding_manager_forward.1} parent=1 // pred_check_branch
      %70 = sbr.rel (0) target = $region29
    $region28: #{embedding_manager_forward.1} parent=1 // pred_region
      %72 = vsyncadd [#allocation13], 0
      %s73 = sshll.u32 %s7, 4
      %s74 = int_to_ptr.hbm [resolvable:$true] %s73
      %s75 = sshll.u32 [#allocation12], 4
      %s76 = int_to_ptr.vmem [resolvable:$true] %s75
      %81 = dma.hbm_to_vmem [thread:$0]  %s74, 4096, %s76, [#allocation13], 64, 64, 4
    $region29: #{embedding_manager_forward.1} parent=1 // pred_fallthru
      _
    // Predicated region
    $region30: #{embedding_manager_forward.1} parent=1 // pred_check
      _
    $region31: #{embedding_manager_forward.1} parent=1 // pred_check_branch
      %83 = sbr.rel (0) target = $region33
    $region32: #{embedding_manager_forward.1} parent=1 // pred_region
      %85 = vsyncadd [#allocation13], 0
      %s86 = sshll.u32 %s8, 4
      %s87 = int_to_ptr.hbm [resolvable:$true] %s86
      %s88 = sshll.u32 [#allocation14], 4
      %s89 = int_to_ptr.vmem [resolvable:$true] %s88
      %94 = dma.hbm_to_vmem [thread:$0]  %s87, 1024, %s89, [#allocation13], 64, 64, 4
    $region33: #{embedding_manager_forward.1} parent=1 // pred_fallthru
      _
    // Predicated region
    $region34: #{embedding_manager_forward.1} parent=1 // pred_check
      _
    $region35: #{embedding_manager_forward.1} parent=1 // pred_check_branch
      %96 = sbr.rel (0) target = $region37
    $region36: #{embedding_manager_forward.1} parent=1 // pred_region
      %98 = dma.done [#allocation7], 32
    $region37: #{embedding_manager_forward.1} parent=1 // pred_fallthru
      _
    // Predicated region
    $region38: #{embedding_manager_forward.1} parent=1 // pred_check
      _
    $region39: #{embedding_manager_forward.1} parent=1 // pred_check_branch
      %100 = sbr.rel (0) target = $region41
    $region40: #{embedding_manager_forward.1} parent=1 // pred_region
      %102 = dma.done [#allocation6], 192
    $region41: #{embedding_manager_forward.1} parent=1 // pred_fallthru
      _
    // Predicated region
    $region42: #{embedding_manager_forward.1} parent=1 // pred_check
      _
    $region43: #{embedding_manager_forward.1} parent=1 // pred_check_branch
      %104 = sbr.rel (0) target = $region45
    $region44: #{embedding_manager_forward.1} parent=1 // pred_region
      %106 = dma.done [#allocation10], 4096
    $region45: #{embedding_manager_forward.1} parent=1 // pred_fallthru
      _
    // Predicated region
    $region46: #{embedding_manager_forward.1} parent=1 // pred_check
      _
    $region47: #{embedding_manager_forward.1} parent=1 // pred_check_branch
      %108 = sbr.rel (0) target = $region49
    $region48: #{embedding_manager_forward.1} parent=1 // pred_region
      %110 = dma.done [#allocation10], 16384
    $region49: #{embedding_manager_forward.1} parent=1 // pred_fallthru
      _
    // Predicated region
    $region50: #{embedding_manager_forward.1} parent=1 // pred_check
      _
    $region51: #{embedding_manager_forward.1} parent=1 // pred_check_branch
      %112 = sbr.rel (0) target = $region53
    $region52: #{embedding_manager_forward.1} parent=1 // pred_region
      %114 = dma.done [#allocation13], 4096
    $region53: #{embedding_manager_forward.1} parent=1 // pred_fallthru
      _
    // Predicated region
    $region54: #{embedding_manager_forward.1} parent=1 // pred_check
      _
    $region55: #{embedding_manager_forward.1} parent=1 // pred_check_branch
      %116 = sbr.rel (0) target = $region57
    $region56: #{embedding_manager_forward.1} parent=1 // pred_region
      %118 = dma.done [#allocation13], 1024
    $region57: #{embedding_manager_forward.1} parent=1 // pred_fallthru
      _
    %119 = sfence
    %s120 = sld [smem:[#allocation4]]
    %s121 = sld [smem:[#allocation5]]
    %p122 = scmp.eq.s32.totalorder %s121, %s120
    %s123 = scalar_select %p122, 0, 4294967295
    %s124 = sld [smem:[#allocation5 + $0x1]]
    %p125 = scmp.eq.s32.totalorder %s124, %s120
    %s126 = scalar_select %p125, 1, %s123
    %s127 = sld [smem:[#allocation5 + $0x2]]
    %p128 = scmp.eq.s32.totalorder %s127, %s120
    %s129 = scalar_select %p128, 2, %s126
    %s130 = sld [smem:[#allocation5 + $0x3]]
    %p131 = scmp.eq.s32.totalorder %s130, %s120
    %s132 = scalar_select %p131, 3, %s129
    %s133 = sld [smem:[#allocation5 + $0x4]]
    %p134 = scmp.eq.s32.totalorder %s133, %s120
    %s135 = scalar_select %p134, 4, %s132
    %s136 = sld [smem:[#allocation5 + $0x5]]
    %p137 = scmp.eq.s32.totalorder %s136, %s120
    %s138 = scalar_select %p137, 5, %s135
    %s139 = sld [smem:[#allocation5 + $0x6]]
    %p140 = scmp.eq.s32.totalorder %s139, %s120
    %s141 = scalar_select %p140, 6, %s138
    %s142 = sld [smem:[#allocation5 + $0x7]]
    %p143 = scmp.eq.s32.totalorder %s142, %s120
    %s144 = scalar_select %p143, 7, %s141
    %s145 = sld [smem:[#allocation5 + $0x80]]
    %p146 = scmp.eq.s32.totalorder %s145, %s120
    %s147 = scalar_select %p146, 0, 4294967295
    %s148 = sld [smem:[#allocation5 + $0x81]]
    %p149 = scmp.eq.s32.totalorder %s148, %s120
    %s150 = scalar_select %p149, 1, %s147
    %s151 = sld [smem:[#allocation5 + $0x82]]
    %p152 = scmp.eq.s32.totalorder %s151, %s120
    %s153 = scalar_select %p152, 2, %s150
    %s154 = sld [smem:[#allocation5 + $0x83]]
    %p155 = scmp.eq.s32.totalorder %s154, %s120
    %s156 = scalar_select %p155, 3, %s153
    %s157 = sld [smem:[#allocation5 + $0x84]]
    %p158 = scmp.eq.s32.totalorder %s157, %s120
    %s159 = scalar_select %p158, 4, %s156
    %s160 = sld [smem:[#allocation5 + $0x85]]
    %p161 = scmp.eq.s32.totalorder %s160, %s120
    %s162 = scalar_select %p161, 5, %s159
    %s163 = sld [smem:[#allocation5 + $0x86]]
    %p164 = scmp.eq.s32.totalorder %s163, %s120
    %s165 = scalar_select %p164, 6, %s162
    %s166 = sld [smem:[#allocation5 + $0x87]]
    %p167 = scmp.eq.s32.totalorder %s166, %s120
    %s168 = scalar_select %p167, 7, %s165
    %v169 = vld [vmem:[%s0] sm:$0x3]
    %v170 = vld [vmem:[#allocation8 + $0xa] sm:$0x1]
    %172 = vset.pattern.permute.xlu0 0
    %173 = vperm.xlu0 %172, %v169
    %v174 = vpop.permute.xlu0 %173
    %v177 = vperm.slane %v170, 0
    %v179 = vmul.f32 %v174, %v177
    %v180 = vld [vmem:[#allocation8 + $0xb] sm:$0x1]
    %vm181 = vcmp.gt.f32.partialorder %v180, 0.5
    %v182 = vand.u32 2147483647, %v179
    %vm183 = vcmp.le.f32.partialorder %v182, 0.7853982
    %vm184 = vcmp.lt.s32.totalorder %v179, 0
    %v185 = vand.u32 %v179, 2139095040
    %v186 = vshrl.u32 %v185, 23
    %v187 = vsub.s32 %v186, 127
    %v188 = vand.u32 2147483647, %v179
    %v189 = vand.u32 %v188, 8388607
    %v190 = vor.u32 %v189, 8388608
    %v191 = vsub.s32 0, %v190
    %v192 = vadd.s32 %v187, 1
    %vm193 = vcmp.gt.s32.totalorder %v192, 0
    %v194 = vsel %vm193, %v192, 0
    %v195 = vshrl.u32 %v194, 5
    %v196 = vand.u32 %v194, 31
    %v197 = vsub.s32 32, %v196
    %v198 = vshrl.u32 683565275, %v197
    %v199 = vshll.u32 683565275, %v196
    %v200 = vshrl.u32 2475754826, %v197
    %v201 = vor.u32 %v199, %v200
    %v202 = vshll.u32 2475754826, %v196
    %v203 = vshrl.u32 2131351028, %v197
    %v204 = vor.u32 %v202, %v203
    %v205 = vshll.u32 2131351028, %v196
    %v206 = vshrl.u32 2102212464, %v197
    %v207 = vor.u32 %v205, %v206
    %v208 = vshll.u32 2102212464, %v196
    %v209 = vshrl.u32 920167782, %v197
    %v210 = vor.u32 %v208, %v209
    %v211 = vshll.u32 920167782, %v196
    %v212 = vshrl.u32 1326507024, %v197
    %v213 = vor.u32 %v211, %v212
    %vm214 = vcmp.lt.s32.totalorder %v195, 1
    %vm215 = vcmp.lt.s32.totalorder %v195, 2
    %vm216 = vcmp.lt.s32.totalorder %v195, 3
    %vm217 = vcmp.lt.s32.totalorder %v195, 4
    %v218 = vsel %vm214, %v198, %v201
    %v219 = vsel %vm217, %v207, 2102212464
    %v220 = vsel %vm216, %v204, %v219
    %v221 = vsel %vm215, %v218, %v220
    %v222 = vsel %vm214, %v201, %v204
    %v223 = vsel %vm217, %v210, 920167782
    %v224 = vsel %vm216, %v207, %v223
    %v225 = vsel %vm215, %v222, %v224
    %v226 = vsel %vm214, %v204, %v207
    %v227 = vsel %vm217, %v213, 1326507024
    %v228 = vsel %vm216, %v210, %v227
    %v229 = vsel %vm215, %v226, %v228
    %v230 = vshll.u32 %v190, 8
    %v231 = vand.u32 %v230, 65535
    %v232 = vshrl.u32 %v230, 16
    %v233 = vand.u32 %v229, 65535
    %v234 = vshrl.u32 %v229, 16
    %v235 = vmul.u32 %v231, %v233
    %v236 = vmul.u32 %v231, %v234
    %v237 = vmul.u32 %v232, %v233
    %v238 = vmul.u32 %v232, %v234
    %v239 = vshll.u32 %v236, 16
    %v240 = vshrl.u32 %v236, 16
    %v241 = vshll.u32 %v237, 16
    %v242 = vshrl.u32 %v237, 16
    %vm243 = vc.u32 %v235, %v239
    %v244 = vsel %vm243, 1, 0
    %v245 = vadd.s32 %v235, %v239
    %v246 = vadd.s32 %v238, %v244
    %vm247 = vc.u32 %v245, %v241
    %v248 = vsel %vm247, 1, 0
    %v249 = vadd.s32 %v245, %v241
    %v250 = vadd.s32 %v246, %v248
    %v251 = vadd.s32 %v250, %v240
    %v252 = vadd.s32 %v251, %v242
    %v253 = vand.u32 %v230, 65535
    %v254 = vshrl.u32 %v230, 16
    %v255 = vand.u32 %v225, 65535
    %v256 = vshrl.u32 %v225, 16
    %v257 = vmul.u32 %v253, %v255
    %v258 = vmul.u32 %v253, %v256
    %v259 = vmul.u32 %v254, %v255
    %v260 = vmul.u32 %v254, %v256
    %v261 = vshll.u32 %v258, 16
    %v262 = vshrl.u32 %v258, 16
    %v263 = vshll.u32 %v259, 16
    %v264 = vshrl.u32 %v259, 16
    %vm265 = vc.u32 %v257, %v261
    %v266 = vsel %vm265, 1, 0
    %v267 = vadd.s32 %v257, %v261
    %v268 = vadd.s32 %v260, %v266
    %vm269 = vc.u32 %v267, %v263
    %v270 = vsel %vm269, 1, 0
    %v271 = vadd.s32 %v267, %v263
    %v272 = vadd.s32 %v268, %v270
    %v273 = vadd.s32 %v272, %v262
    %v274 = vadd.s32 %v273, %v264
    %v275 = vmul.u32 %v230, %v221
    %v276 = vadd.s32 %v252, %v271
    %vm277 = vc.u32 %v252, %v271
    %v278 = vadd.s32 %v274, 1
    %v279 = vsel %vm277, %v278, %v274
    %v280 = vadd.s32 %v275, %v279
    %v281 = vadd.s32 %v280, 536870912
    %v282 = vshrl.u32 %v281, 30
    %v283 = vshll.u32 %v282, 30
    %v284 = vsub.s32 %v280, %v283
    %vm285 = vcmp.lt.s32.totalorder %v284, 0
    %v286 = vsub.s32 0, %v284
    %v287 = vsel %vm285, %v286, %v284
    %v288 = vclz %v287
    %v289 = vsub.s32 %v288, 2
    %vm290 = vcmp.gt.s32.totalorder 0, %v289
    %v291 = vsel %vm290, 0, %v289
    %v292 = vsub.s32 32, %v291
    %v293 = vshll.u32 %v284, %v291
    %v294 = vshrl.u32 %v276, %v292
    %v295 = vor.u32 %v293, %v294
    %v296 = vsub.s32 4294967266, %v291
    %v297 = vadd.s32 %v296, 127
    %v298 = vshll.u32 %v297, 23
    %v299 = vor.u32 4788187, %v298
    %v300 = vand.u32 2147483647, %v299
    %v302 = vcvt.s32.f32 %v295
    %v303 = vmul.f32 %v302, %v300
    %v304 = vxor.u32 %v303, 2147483648
    %v305 = vsel %vm184, %v304, %v303
    %v306 = vsub.s32 4, %v282
    %v307 = vsel %vm184, %v306, %v282
    %v308 = vsel %vm183, %v179, %v305
    %v309 = vsel %vm183, 0, %v307
    %v310 = vmul.f32 %v308, %v308
    %v311 = vmul.f32 %v310, -0.001358992
    %v312 = vadd.f32 %v311, 0.041655596
    %v313 = vmul.f32 %v310, %v312
    %v314 = vadd.f32 %v313, -0.4999988
    %v315 = vmul.f32 %v310, %v314
    %v316 = vadd.f32 1.0, %v315
    %v317 = vmul.f32 %v308, %v308
    %v318 = vmul.f32 %v317, -0.00019511016
    %v319 = vadd.f32 %v318, 0.008332121
    %v320 = vmul.f32 %v317, %v319
    %v321 = vadd.f32 %v320, -0.16666654
    %v322 = vmul.f32 %v317, %v321
    %v323 = vadd.f32 %v322, 1.0
    %v324 = vmul.f32 %v323, %v308
    %vm325 = vweird.f32 %v179
    %v326 = vand.u32 %v309, 3
    %vm327 = vcmp.lt.s32.totalorder %v326, 2
    %vm328 = vcmp.eq.s32.totalorder %v326, 0
    %v329 = vxor.u32 %v324, 2147483648
    %v330 = vsel %vm328, %v316, %v329
    %vm331 = vcmp.eq.s32.totalorder %v326, 2
    %v332 = vxor.u32 %v316, 2147483648
    %v333 = vsel %vm331, %v332, %v324
    %v334 = vsel %vm327, %v330, %v333
    %v335 = vsel %vm325, nan, %v334
    %v336 = vand.u32 2147483647, %v179
    %vm337 = vcmp.le.f32.partialorder %v336, 0.7853982
    %vm338 = vcmp.lt.s32.totalorder %v179, 0
    %v339 = vand.u32 %v179, 2139095040
    %v340 = vshrl.u32 %v339, 23
    %v341 = vsub.s32 %v340, 127
    %v342 = vand.u32 2147483647, %v179
    %v343 = vand.u32 %v342, 8388607
    %v344 = vor.u32 %v343, 8388608
    %v345 = vsub.s32 0, %v344
    %v346 = vadd.s32 %v341, 1
    %vm347 = vcmp.gt.s32.totalorder %v346, 0
    %v348 = vsel %vm347, %v346, 0
    %v349 = vshrl.u32 %v348, 5
    %v350 = vand.u32 %v348, 31
    %v351 = vsub.s32 32, %v350
    %v352 = vshrl.u32 683565275, %v351
    %v353 = vshll.u32 683565275, %v350
    %v354 = vshrl.u32 2475754826, %v351
    %v355 = vor.u32 %v353, %v354
    %v356 = vshll.u32 2475754826, %v350
    %v357 = vshrl.u32 2131351028, %v351
    %v358 = vor.u32 %v356, %v357
    %v359 = vshll.u32 2131351028, %v350
    %v360 = vshrl.u32 2102212464, %v351
    %v361 = vor.u32 %v359, %v360
    %v362 = vshll.u32 2102212464, %v350
    %v363 = vshrl.u32 920167782, %v351
    %v364 = vor.u32 %v362, %v363
    %v365 = vshll.u32 920167782, %v350
    %v366 = vshrl.u32 1326507024, %v351
    %v367 = vor.u32 %v365, %v366
    %vm368 = vcmp.lt.s32.totalorder %v349, 1
    %vm369 = vcmp.lt.s32.totalorder %v349, 2
    %vm370 = vcmp.lt.s32.totalorder %v349, 3
    %vm371 = vcmp.lt.s32.totalorder %v349, 4
    %v372 = vsel %vm368, %v352, %v355
    %v373 = vsel %vm371, %v361, 2102212464
    %v374 = vsel %vm370, %v358, %v373
    %v375 = vsel %vm369, %v372, %v374
    %v376 = vsel %vm368, %v355, %v358
    %v377 = vsel %vm371, %v364, 920167782
    %v378 = vsel %vm370, %v361, %v377
    %v379 = vsel %vm369, %v376, %v378
    %v380 = vsel %vm368, %v358, %v361
    %v381 = vsel %vm371, %v367, 1326507024
    %v382 = vsel %vm370, %v364, %v381
    %v383 = vsel %vm369, %v380, %v382
    %v384 = vshll.u32 %v344, 8
    %v385 = vand.u32 %v384, 65535
    %v386 = vshrl.u32 %v384, 16
    %v387 = vand.u32 %v383, 65535
    %v388 = vshrl.u32 %v383, 16
    %v389 = vmul.u32 %v385, %v387
    %v390 = vmul.u32 %v385, %v388
    %v391 = vmul.u32 %v386, %v387
    %v392 = vmul.u32 %v386, %v388
    %v393 = vshll.u32 %v390, 16
    %v394 = vshrl.u32 %v390, 16
    %v395 = vshll.u32 %v391, 16
    %v396 = vshrl.u32 %v391, 16
    %vm397 = vc.u32 %v389, %v393
    %v398 = vsel %vm397, 1, 0
    %v399 = vadd.s32 %v389, %v393
    %v400 = vadd.s32 %v392, %v398
    %vm401 = vc.u32 %v399, %v395
    %v402 = vsel %vm401, 1, 0
    %v403 = vadd.s32 %v399, %v395
    %v404 = vadd.s32 %v400, %v402
    %v405 = vadd.s32 %v404, %v394
    %v406 = vadd.s32 %v405, %v396
    %v407 = vand.u32 %v384, 65535
    %v408 = vshrl.u32 %v384, 16
    %v409 = vand.u32 %v379, 65535
    %v410 = vshrl.u32 %v379, 16
    %v411 = vmul.u32 %v407, %v409
    %v412 = vmul.u32 %v407, %v410
    %v413 = vmul.u32 %v408, %v409
    %v414 = vmul.u32 %v408, %v410
    %v415 = vshll.u32 %v412, 16
    %v416 = vshrl.u32 %v412, 16
    %v417 = vshll.u32 %v413, 16
    %v418 = vshrl.u32 %v413, 16
    %vm419 = vc.u32 %v411, %v415
    %v420 = vsel %vm419, 1, 0
    %v421 = vadd.s32 %v411, %v415
    %v422 = vadd.s32 %v414, %v420
    %vm423 = vc.u32 %v421, %v417
    %v424 = vsel %vm423, 1, 0
    %v425 = vadd.s32 %v421, %v417
    %v426 = vadd.s32 %v422, %v424
    %v427 = vadd.s32 %v426, %v416
    %v428 = vadd.s32 %v427, %v418
    %v429 = vmul.u32 %v384, %v375
    %v430 = vadd.s32 %v406, %v425
    %vm431 = vc.u32 %v406, %v425
    %v432 = vadd.s32 %v428, 1
    %v433 = vsel %vm431, %v432, %v428
    %v434 = vadd.s32 %v429, %v433
    %v435 = vadd.s32 %v434, 536870912
    %v436 = vshrl.u32 %v435, 30
    %v437 = vshll.u32 %v436, 30
    %v438 = vsub.s32 %v434, %v437
    %vm439 = vcmp.lt.s32.totalorder %v438, 0
    %v440 = vsub.s32 0, %v438
    %v441 = vsel %vm439, %v440, %v438
    %v442 = vclz %v441
    %v443 = vsub.s32 %v442, 2
    %vm444 = vcmp.gt.s32.totalorder 0, %v443
    %v445 = vsel %vm444, 0, %v443
    %v446 = vsub.s32 32, %v445
    %v447 = vshll.u32 %v438, %v445
    %v448 = vshrl.u32 %v430, %v446
    %v449 = vor.u32 %v447, %v448
    %v450 = vsub.s32 4294967266, %v445
    %v451 = vadd.s32 %v450, 127
    %v452 = vshll.u32 %v451, 23
    %v453 = vor.u32 4788187, %v452
    %v454 = vand.u32 2147483647, %v453
    %v456 = vcvt.s32.f32 %v449
    %v457 = vmul.f32 %v456, %v454
    %v458 = vxor.u32 %v457, 2147483648
    %v459 = vsel %vm338, %v458, %v457
    %v460 = vsub.s32 4, %v436
    %v461 = vsel %vm338, %v460, %v436
    %v462 = vsel %vm337, %v179, %v459
    %v463 = vsel %vm337, 0, %v461
    %v464 = vmul.f32 %v462, %v462
    %v465 = vmul.f32 %v464, -0.001358992
    %v466 = vadd.f32 %v465, 0.041655596
    %v467 = vmul.f32 %v464, %v466
    %v468 = vadd.f32 %v467, -0.4999988
    %v469 = vmul.f32 %v464, %v468
    %v470 = vadd.f32 1.0, %v469
    %v471 = vmul.f32 %v462, %v462
    %v472 = vmul.f32 %v471, -0.00019511016
    %v473 = vadd.f32 %v472, 0.008332121
    %v474 = vmul.f32 %v471, %v473
    %v475 = vadd.f32 %v474, -0.16666654
    %v476 = vmul.f32 %v471, %v475
    %v477 = vadd.f32 %v476, 1.0
    %v478 = vmul.f32 %v477, %v462
    %vm479 = vweird.f32 %v179
    %v480 = vadd.s32 %v463, 3
    %v481 = vand.u32 %v480, 3
    %vm482 = vcmp.lt.s32.totalorder %v481, 2
    %vm483 = vcmp.eq.s32.totalorder %v481, 0
    %v484 = vxor.u32 %v478, 2147483648
    %v485 = vsel %vm483, %v470, %v484
    %vm486 = vcmp.eq.s32.totalorder %v481, 2
    %v487 = vxor.u32 %v470, 2147483648
    %v488 = vsel %vm486, %v487, %v478
    %v489 = vsel %vm482, %v485, %v488
    %v490 = vsel %vm479, nan, %v489
    %v491 = vsel %vm181, 1, 0
    %v492 = vperm.slane %v491, 0
    %vm493 = vcmp.eq.s32.totalorder %v492, 1
    %v494 = vsel %vm493, %v335, %v490
    %v495 = vld [vmem:[#allocation8] sm:$0xf]
    %v496 = vpack.c.bf16 %v494, %v494
    %v497 = vld [vmem:[#allocation9] sm:$0xff]
    %v498 = vld [vmem:[#allocation9 + $0x8] sm:$0xff]
    %v499 = vld [vmem:[#allocation9 + $0x10] sm:$0xff]
    %v500 = vld [vmem:[#allocation9 + $0x18] sm:$0xff]
    %v501 = vld [vmem:[#allocation9 + $0x20] sm:$0xff]
    %v502 = vld [vmem:[#allocation9 + $0x28] sm:$0xff]
    %v503 = vld [vmem:[#allocation9 + $0x30] sm:$0xff]
    %v504 = vld [vmem:[#allocation9 + $0x38] sm:$0xff]
    %v505 = vld [vmem:[#allocation9 + $0x40] sm:$0xff]
    %v506 = vld [vmem:[#allocation9 + $0x48] sm:$0xff]
    %v507 = vld [vmem:[#allocation9 + $0x50] sm:$0xff]
    %v508 = vld [vmem:[#allocation9 + $0x58] sm:$0xff]
    %v509 = vld [vmem:[#allocation9 + $0x60] sm:$0xff]
    %v510 = vld [vmem:[#allocation9 + $0x68] sm:$0xff]
    %v511 = vld [vmem:[#allocation9 + $0x70] sm:$0xff]
    %v512 = vld [vmem:[#allocation9 + $0x78] sm:$0xff]
    %v513 = vld [vmem:[#allocation9 + $0x80] sm:$0xff]
    %v514 = vld [vmem:[#allocation9 + $0x88] sm:$0xff]
    %v515 = vld [vmem:[#allocation9 + $0x90] sm:$0xff]
    %v516 = vld [vmem:[#allocation9 + $0x98] sm:$0xff]
    %v517 = vld [vmem:[#allocation9 + $0xa0] sm:$0xff]
    %v518 = vld [vmem:[#allocation9 + $0xa8] sm:$0xff]
    %v519 = vld [vmem:[#allocation9 + $0xb0] sm:$0xff]
    %v520 = vld [vmem:[#allocation9 + $0xb8] sm:$0xff]
    %v521 = vld [vmem:[#allocation9 + $0xc0] sm:$0xff]
    %v522 = vld [vmem:[#allocation9 + $0xc8] sm:$0xff]
    %v523 = vld [vmem:[#allocation9 + $0xd0] sm:$0xff]
    %v524 = vld [vmem:[#allocation9 + $0xd8] sm:$0xff]
    %v525 = vld [vmem:[#allocation9 + $0xe0] sm:$0xff]
    %v526 = vld [vmem:[#allocation9 + $0xe8] sm:$0xff]
    %v527 = vld [vmem:[#allocation9 + $0xf0] sm:$0xff]
    %v528 = vld [vmem:[#allocation9 + $0xf8] sm:$0xff]
    %v530 = vperm.slane %v495, 0
    %v531 = vperm.slane %v495, 1
    %v532 = vperm.slane %v495, 2
    %v533 = vperm.slane %v495, 3
    %v570 = vunpack.c.l.b16 %v497
    %v571 = vunpack.c.h.b16 %v497
    %v572 = vunpack.c.l.b16 %v498
    %v573 = vunpack.c.h.b16 %v498
    %v574 = vunpack.c.l.b16 %v499
    %v575 = vunpack.c.h.b16 %v499
    %v576 = vunpack.c.l.b16 %v500
    %v577 = vunpack.c.h.b16 %v500
    %v578 = vunpack.c.l.b16 %v501
    %v579 = vunpack.c.h.b16 %v501
    %v580 = vunpack.c.l.b16 %v502
    %v581 = vunpack.c.h.b16 %v502
    %v582 = vunpack.c.l.b16 %v503
    %v583 = vunpack.c.h.b16 %v503
    %v584 = vunpack.c.l.b16 %v504
    %v585 = vunpack.c.h.b16 %v504
    %v586 = vunpack.c.l.b16 %v505
    %v587 = vunpack.c.h.b16 %v505
    %v588 = vunpack.c.l.b16 %v506
    %v589 = vunpack.c.h.b16 %v506
    %v590 = vunpack.c.l.b16 %v507
    %v591 = vunpack.c.h.b16 %v507
    %v592 = vunpack.c.l.b16 %v508
    %v593 = vunpack.c.h.b16 %v508
    %v594 = vunpack.c.l.b16 %v509
    %v595 = vunpack.c.h.b16 %v509
    %v596 = vunpack.c.l.b16 %v510
    %v597 = vunpack.c.h.b16 %v510
    %v598 = vunpack.c.l.b16 %v511
    %v599 = vunpack.c.h.b16 %v511
    %v600 = vunpack.c.l.b16 %v512
    %v601 = vunpack.c.h.b16 %v512
    %v602 = vunpack.c.l.b16 %v513
    %v603 = vunpack.c.h.b16 %v513
    %v604 = vunpack.c.l.b16 %v514
    %v605 = vunpack.c.h.b16 %v514
    %v606 = vunpack.c.l.b16 %v515
    %v607 = vunpack.c.h.b16 %v515
    %v608 = vunpack.c.l.b16 %v516
    %v609 = vunpack.c.h.b16 %v516
    %v610 = vunpack.c.l.b16 %v517
    %v611 = vunpack.c.h.b16 %v517
    %v612 = vunpack.c.l.b16 %v518
    %v613 = vunpack.c.h.b16 %v518
    %v614 = vunpack.c.l.b16 %v519
    %v615 = vunpack.c.h.b16 %v519
    %v616 = vunpack.c.l.b16 %v520
    %v617 = vunpack.c.h.b16 %v520
    %v618 = vunpack.c.l.b16 %v521
    %v619 = vunpack.c.h.b16 %v521
    %v620 = vunpack.c.l.b16 %v522
    %v621 = vunpack.c.h.b16 %v522
    %v622 = vunpack.c.l.b16 %v523
    %v623 = vunpack.c.h.b16 %v523
    %v624 = vunpack.c.l.b16 %v524
    %v625 = vunpack.c.h.b16 %v524
    %v626 = vunpack.c.l.b16 %v525
    %v627 = vunpack.c.h.b16 %v525
    %v628 = vunpack.c.l.b16 %v526
    %v629 = vunpack.c.h.b16 %v526
    %v630 = vunpack.c.l.b16 %v527
    %v631 = vunpack.c.h.b16 %v527
    %v632 = vunpack.c.l.b16 %v528
    %v633 = vunpack.c.h.b16 %v528
    %v634 = vpack.c.b16 %v574, %v570
    %v635 = vpack.c.b16 %v575, %v571
    %v636 = vpack.c.b16 %v576, %v572
    %v637 = vpack.c.b16 %v577, %v573
    %v638 = vpack.c.b16 %v582, %v578
    %v639 = vpack.c.b16 %v583, %v579
    %v640 = vpack.c.b16 %v584, %v580
    %v641 = vpack.c.b16 %v585, %v581
    %v642 = vpack.c.b16 %v590, %v586
    %v643 = vpack.c.b16 %v591, %v587
    %v644 = vpack.c.b16 %v592, %v588
    %v645 = vpack.c.b16 %v593, %v589
    %v646 = vpack.c.b16 %v598, %v594
    %v647 = vpack.c.b16 %v599, %v595
    %v648 = vpack.c.b16 %v600, %v596
    %v649 = vpack.c.b16 %v601, %v597
    %v650 = vpack.c.b16 %v606, %v602
    %v651 = vpack.c.b16 %v607, %v603
    %v652 = vpack.c.b16 %v608, %v604
    %v653 = vpack.c.b16 %v609, %v605
    %v654 = vpack.c.b16 %v614, %v610
    %v655 = vpack.c.b16 %v615, %v611
    %v656 = vpack.c.b16 %v616, %v612
    %v657 = vpack.c.b16 %v617, %v613
    %v658 = vpack.c.b16 %v622, %v618
    %v659 = vpack.c.b16 %v623, %v619
    %v660 = vpack.c.b16 %v624, %v620
    %v661 = vpack.c.b16 %v625, %v621
    %v662 = vpack.c.b16 %v630, %v626
    %v663 = vpack.c.b16 %v631, %v627
    %v664 = vpack.c.b16 %v632, %v628
    %v665 = vpack.c.b16 %v633, %v629
    %698 = vmatpush.bf16.msra.mxu0 %v662
    %699 = vmatpush.bf16.msra.mxu0 %v658
    %700 = vmatpush.bf16.msra.mxu0 %v654
    %701 = vmatpush.bf16.msra.mxu0 %v650
    %702 = vmatpush.bf16.msra.mxu0 %v646
    %703 = vmatpush.bf16.msra.mxu0 %v642
    %704 = vmatpush.bf16.msra.mxu0 %v638
    %705 = vmatpush.bf16.msra.mxu0 %v634
    %706 = vmatmul.bf16.gmra.mxu0 %v496
    %v707 = vpop.f32.mrf.mxu0
    %v708 = vadd.f32 %v530, %v707
    %v709 = vpop.f32.mrf.mxu0
    %710 = vdwg.mxu0
    %711 = vmatpush.bf16.msra.mxu0 %v663
    %712 = vmatpush.bf16.msra.mxu0 %v659
    %713 = vmatpush.bf16.msra.mxu0 %v655
    %714 = vmatpush.bf16.msra.mxu0 %v651
    %715 = vmatpush.bf16.msra.mxu0 %v647
    %716 = vmatpush.bf16.msra.mxu0 %v643
    %717 = vmatpush.bf16.msra.mxu0 %v639
    %718 = vmatpush.bf16.msra.mxu0 %v635
    %719 = vmatmul.bf16.gmra.mxu0 %v496
    %v720 = vpop.f32.mrf.mxu0
    %v721 = vadd.f32 %v531, %v720
    %v722 = vpop.f32.mrf.mxu0
    %723 = vdwg.mxu0
    %724 = vmatpush.bf16.msra.mxu0 %v664
    %725 = vmatpush.bf16.msra.mxu0 %v660
    %726 = vmatpush.bf16.msra.mxu0 %v656
    %727 = vmatpush.bf16.msra.mxu0 %v652
    %728 = vmatpush.bf16.msra.mxu0 %v648
    %729 = vmatpush.bf16.msra.mxu0 %v644
    %730 = vmatpush.bf16.msra.mxu0 %v640
    %731 = vmatpush.bf16.msra.mxu0 %v636
    %732 = vmatmul.bf16.gmra.mxu0 %v496
    %v733 = vpop.f32.mrf.mxu0
    %v734 = vadd.f32 %v532, %v733
    %v735 = vpop.f32.mrf.mxu0
    %736 = vdwg.mxu0
    %737 = vmatpush.bf16.msra.mxu0 %v665
    %738 = vmatpush.bf16.msra.mxu0 %v661
    %739 = vmatpush.bf16.msra.mxu0 %v657
    %740 = vmatpush.bf16.msra.mxu0 %v653
    %741 = vmatpush.bf16.msra.mxu0 %v649
    %742 = vmatpush.bf16.msra.mxu0 %v645
    %743 = vmatpush.bf16.msra.mxu0 %v641
    %744 = vmatpush.bf16.msra.mxu0 %v637
    %745 = vmatmul.bf16.gmra.mxu0 %v496
    %v746 = vpop.f32.mrf.mxu0
    %v747 = vadd.f32 %v533, %v746
    %v748 = vpop.f32.mrf.mxu0
    %749 = vdwg.mxu0
    %v750 = vxor.u32 %v708, 2147483648
    %v751 = vxor.u32 %v721, 2147483648
    %v752 = vxor.u32 %v734, 2147483648
    %v753 = vxor.u32 %v747, 2147483648
    %v754 = vmul.f32 %v750, 1.442695
    %v755 = vpow.pop %v754
    %v756 = vmul.f32 %v751, 1.442695
    %v757 = vpow.pop %v756
    %v758 = vmul.f32 %v752, 1.442695
    %v759 = vpow.pop %v758
    %v760 = vmul.f32 %v753, 1.442695
    %v761 = vpow.pop %v760
    %v762 = vadd.f32 %v755, 1.0
    %v763 = vadd.f32 %v757, 1.0
    %v764 = vadd.f32 %v759, 1.0
    %v765 = vadd.f32 %v761, 1.0
    %v766 = vrcp.pop %v762
    %v767 = vmul.f32 %v762, %v766
    %v768 = vsub.f32 1.0, %v767
    %v769 = vmul.f32 %v766, %v768
    %v770 = vadd.f32 %v766, %v769
    %vm771 = vweird.f32 %v762
    %vm772 = vweird.f32 %v766
    %vm773 = vmor %vm771, %vm772
    %v774 = vsel %vm773, %v766, %v770
    %v775 = vand.u32 2147483647, %v762
    %vm776 = vcmp.eq.f32.partialorder %v775, 8.507059e+37
    %v777 = vand.u32 %v762, 2147483648
    %v778 = vor.u32 1.1754944e-38, %v777
    %v779 = vsel %vm776, %v778, %v774
    %v780 = vmul.f32 1.0, %v779
    %v781 = vrcp.pop %v763
    %v782 = vmul.f32 %v763, %v781
    %v783 = vsub.f32 1.0, %v782
    %v784 = vmul.f32 %v781, %v783
    %v785 = vadd.f32 %v781, %v784
    %vm786 = vweird.f32 %v763
    %vm787 = vweird.f32 %v781
    %vm788 = vmor %vm786, %vm787
    %v789 = vsel %vm788, %v781, %v785
    %v790 = vand.u32 2147483647, %v763
    %vm791 = vcmp.eq.f32.partialorder %v790, 8.507059e+37
    %v792 = vand.u32 %v763, 2147483648
    %v793 = vor.u32 1.1754944e-38, %v792
    %v794 = vsel %vm791, %v793, %v789
    %v795 = vmul.f32 1.0, %v794
    %v796 = vrcp.pop %v764
    %v797 = vmul.f32 %v764, %v796
    %v798 = vsub.f32 1.0, %v797
    %v799 = vmul.f32 %v796, %v798
    %v800 = vadd.f32 %v796, %v799
    %vm801 = vweird.f32 %v764
    %vm802 = vweird.f32 %v796
    %vm803 = vmor %vm801, %vm802
    %v804 = vsel %vm803, %v796, %v800
    %v805 = vand.u32 2147483647, %v764
    %vm806 = vcmp.eq.f32.partialorder %v805, 8.507059e+37
    %v807 = vand.u32 %v764, 2147483648
    %v808 = vor.u32 1.1754944e-38, %v807
    %v809 = vsel %vm806, %v808, %v804
    %v810 = vmul.f32 1.0, %v809
    %v811 = vrcp.pop %v765
    %v812 = vmul.f32 %v765, %v811
    %v813 = vsub.f32 1.0, %v812
    %v814 = vmul.f32 %v811, %v813
    %v815 = vadd.f32 %v811, %v814
    %vm816 = vweird.f32 %v765
    %vm817 = vweird.f32 %v811
    %vm818 = vmor %vm816, %vm817
    %v819 = vsel %vm818, %v811, %v815
    %v820 = vand.u32 2147483647, %v765
    %vm821 = vcmp.eq.f32.partialorder %v820, 8.507059e+37
    %v822 = vand.u32 %v765, 2147483648
    %v823 = vor.u32 1.1754944e-38, %v822
    %v824 = vsel %vm821, %v823, %v819
    %v825 = vmul.f32 1.0, %v824
    %v826 = vmul.f32 %v708, %v780
    %v827 = vmul.f32 %v721, %v795
    %v828 = vmul.f32 %v734, %v810
    %v829 = vmul.f32 %v747, %v825
    %v830 = vld [vmem:[#allocation8 + $0x4] sm:$0xf]
    %v831 = vpack.c.bf16 %v826, %v826
    %v832 = vpack.c.bf16 %v827, %v827
    %v833 = vpack.c.bf16 %v828, %v828
    %v834 = vpack.c.bf16 %v829, %v829
    %v835 = vld [vmem:[#allocation11] sm:$0xff]
    %v836 = vld [vmem:[#allocation11 + $0x8] sm:$0xff]
    %v837 = vld [vmem:[#allocation11 + $0x10] sm:$0xff]
    %v838 = vld [vmem:[#allocation11 + $0x18] sm:$0xff]
    %v839 = vld [vmem:[#allocation11 + $0x20] sm:$0xff]
    %v840 = vld [vmem:[#allocation11 + $0x28] sm:$0xff]
    %v841 = vld [vmem:[#allocation11 + $0x30] sm:$0xff]
    %v842 = vld [vmem:[#allocation11 + $0x38] sm:$0xff]
    %v843 = vld [vmem:[#allocation11 + $0x40] sm:$0xff]
    %v844 = vld [vmem:[#allocation11 + $0x48] sm:$0xff]
    %v845 = vld [vmem:[#allocation11 + $0x50] sm:$0xff]
    %v846 = vld [vmem:[#allocation11 + $0x58] sm:$0xff]
    %v847 = vld [vmem:[#allocation11 + $0x60] sm:$0xff]
    %v848 = vld [vmem:[#allocation11 + $0x68] sm:$0xff]
    %v849 = vld [vmem:[#allocation11 + $0x70] sm:$0xff]
    %v850 = vld [vmem:[#allocation11 + $0x78] sm:$0xff]
    %v851 = vld [vmem:[#allocation11 + $0x80] sm:$0xff]
    %v852 = vld [vmem:[#allocation11 + $0x88] sm:$0xff]
    %v853 = vld [vmem:[#allocation11 + $0x90] sm:$0xff]
    %v854 = vld [vmem:[#allocation11 + $0x98] sm:$0xff]
    %v855 = vld [vmem:[#allocation11 + $0xa0] sm:$0xff]
    %v856 = vld [vmem:[#allocation11 + $0xa8] sm:$0xff]
    %v857 = vld [vmem:[#allocation11 + $0xb0] sm:$0xff]
    %v858 = vld [vmem:[#allocation11 + $0xb8] sm:$0xff]
    %v859 = vld [vmem:[#allocation11 + $0xc0] sm:$0xff]
    %v860 = vld [vmem:[#allocation11 + $0xc8] sm:$0xff]
    %v861 = vld [vmem:[#allocation11 + $0xd0] sm:$0xff]
    %v862 = vld [vmem:[#allocation11 + $0xd8] sm:$0xff]
    %v863 = vld [vmem:[#allocation11 + $0xe0] sm:$0xff]
    %v864 = vld [vmem:[#allocation11 + $0xe8] sm:$0xff]
    %v865 = vld [vmem:[#allocation11 + $0xf0] sm:$0xff]
    %v866 = vld [vmem:[#allocation11 + $0xf8] sm:$0xff]
    %v867 = vld [vmem:[#allocation11 + $0x100] sm:$0xff]
    %v868 = vld [vmem:[#allocation11 + $0x108] sm:$0xff]
    %v869 = vld [vmem:[#allocation11 + $0x110] sm:$0xff]
    %v870 = vld [vmem:[#allocation11 + $0x118] sm:$0xff]
    %v871 = vld [vmem:[#allocation11 + $0x120] sm:$0xff]
    %v872 = vld [vmem:[#allocation11 + $0x128] sm:$0xff]
    %v873 = vld [vmem:[#allocation11 + $0x130] sm:$0xff]
    %v874 = vld [vmem:[#allocation11 + $0x138] sm:$0xff]
    %v875 = vld [vmem:[#allocation11 + $0x140] sm:$0xff]
    %v876 = vld [vmem:[#allocation11 + $0x148] sm:$0xff]
    %v877 = vld [vmem:[#allocation11 + $0x150] sm:$0xff]
    %v878 = vld [vmem:[#allocation11 + $0x158] sm:$0xff]
    %v879 = vld [vmem:[#allocation11 + $0x160] sm:$0xff]
    %v880 = vld [vmem:[#allocation11 + $0x168] sm:$0xff]
    %v881 = vld [vmem:[#allocation11 + $0x170] sm:$0xff]
    %v882 = vld [vmem:[#allocation11 + $0x178] sm:$0xff]
    %v883 = vld [vmem:[#allocation11 + $0x180] sm:$0xff]
    %v884 = vld [vmem:[#allocation11 + $0x188] sm:$0xff]
    %v885 = vld [vmem:[#allocation11 + $0x190] sm:$0xff]
    %v886 = vld [vmem:[#allocation11 + $0x198] sm:$0xff]
    %v887 = vld [vmem:[#allocation11 + $0x1a0] sm:$0xff]
    %v888 = vld [vmem:[#allocation11 + $0x1a8] sm:$0xff]
    %v889 = vld [vmem:[#allocation11 + $0x1b0] sm:$0xff]
    %v890 = vld [vmem:[#allocation11 + $0x1b8] sm:$0xff]
    %v891 = vld [vmem:[#allocation11 + $0x1c0] sm:$0xff]
    %v892 = vld [vmem:[#allocation11 + $0x1c8] sm:$0xff]
    %v893 = vld [vmem:[#allocation11 + $0x1d0] sm:$0xff]
    %v894 = vld [vmem:[#allocation11 + $0x1d8] sm:$0xff]
    %v895 = vld [vmem:[#allocation11 + $0x1e0] sm:$0xff]
    %v896 = vld [vmem:[#allocation11 + $0x1e8] sm:$0xff]
    %v897 = vld [vmem:[#allocation11 + $0x1f0] sm:$0xff]
    %v898 = vld [vmem:[#allocation11 + $0x1f8] sm:$0xff]
    %v899 = vld [vmem:[#allocation11 + $0x200] sm:$0xff]
    %v900 = vld [vmem:[#allocation11 + $0x208] sm:$0xff]
    %v901 = vld [vmem:[#allocation11 + $0x210] sm:$0xff]
    %v902 = vld [vmem:[#allocation11 + $0x218] sm:$0xff]
    %v903 = vld [vmem:[#allocation11 + $0x220] sm:$0xff]
    %v904 = vld [vmem:[#allocation11 + $0x228] sm:$0xff]
    %v905 = vld [vmem:[#allocation11 + $0x230] sm:$0xff]
    %v906 = vld [vmem:[#allocation11 + $0x238] sm:$0xff]
    %v907 = vld [vmem:[#allocation11 + $0x240] sm:$0xff]
    %v908 = vld [vmem:[#allocation11 + $0x248] sm:$0xff]
    %v909 = vld [vmem:[#allocation11 + $0x250] sm:$0xff]
    %v910 = vld [vmem:[#allocation11 + $0x258] sm:$0xff]
    %v911 = vld [vmem:[#allocation11 + $0x260] sm:$0xff]
    %v912 = vld [vmem:[#allocation11 + $0x268] sm:$0xff]
    %v913 = vld [vmem:[#allocation11 + $0x270] sm:$0xff]
    %v914 = vld [vmem:[#allocation11 + $0x278] sm:$0xff]
    %v915 = vld [vmem:[#allocation11 + $0x280] sm:$0xff]
    %v916 = vld [vmem:[#allocation11 + $0x288] sm:$0xff]
    %v917 = vld [vmem:[#allocation11 + $0x290] sm:$0xff]
    %v918 = vld [vmem:[#allocation11 + $0x298] sm:$0xff]
    %v919 = vld [vmem:[#allocation11 + $0x2a0] sm:$0xff]
    %v920 = vld [vmem:[#allocation11 + $0x2a8] sm:$0xff]
    %v921 = vld [vmem:[#allocation11 + $0x2b0] sm:$0xff]
    %v922 = vld [vmem:[#allocation11 + $0x2b8] sm:$0xff]
    %v923 = vld [vmem:[#allocation11 + $0x2c0] sm:$0xff]
    %v924 = vld [vmem:[#allocation11 + $0x2c8] sm:$0xff]
    %v925 = vld [vmem:[#allocation11 + $0x2d0] sm:$0xff]
    %v926 = vld [vmem:[#allocation11 + $0x2d8] sm:$0xff]
    %v927 = vld [vmem:[#allocation11 + $0x2e0] sm:$0xff]
    %v928 = vld [vmem:[#allocation11 + $0x2e8] sm:$0xff]
    %v929 = vld [vmem:[#allocation11 + $0x2f0] sm:$0xff]
    %v930 = vld [vmem:[#allocation11 + $0x2f8] sm:$0xff]
    %v931 = vld [vmem:[#allocation11 + $0x300] sm:$0xff]
    %v932 = vld [vmem:[#allocation11 + $0x308] sm:$0xff]
    %v933 = vld [vmem:[#allocation11 + $0x310] sm:$0xff]
    %v934 = vld [vmem:[#allocation11 + $0x318] sm:$0xff]
    %v935 = vld [vmem:[#allocation11 + $0x320] sm:$0xff]
    %v936 = vld [vmem:[#allocation11 + $0x328] sm:$0xff]
    %v937 = vld [vmem:[#allocation11 + $0x330] sm:$0xff]
    %v938 = vld [vmem:[#allocation11 + $0x338] sm:$0xff]
    %v939 = vld [vmem:[#allocation11 + $0x340] sm:$0xff]
    %v940 = vld [vmem:[#allocation11 + $0x348] sm:$0xff]
    %v941 = vld [vmem:[#allocation11 + $0x350] sm:$0xff]
    %v942 = vld [vmem:[#allocation11 + $0x358] sm:$0xff]
    %v943 = vld [vmem:[#allocation11 + $0x360] sm:$0xff]
    %v944 = vld [vmem:[#allocation11 + $0x368] sm:$0xff]
    %v945 = vld [vmem:[#allocation11 + $0x370] sm:$0xff]
    %v946 = vld [vmem:[#allocation11 + $0x378] sm:$0xff]
    %v947 = vld [vmem:[#allocation11 + $0x380] sm:$0xff]
    %v948 = vld [vmem:[#allocation11 + $0x388] sm:$0xff]
    %v949 = vld [vmem:[#allocation11 + $0x390] sm:$0xff]
    %v950 = vld [vmem:[#allocation11 + $0x398] sm:$0xff]
    %v951 = vld [vmem:[#allocation11 + $0x3a0] sm:$0xff]
    %v952 = vld [vmem:[#allocation11 + $0x3a8] sm:$0xff]
    %v953 = vld [vmem:[#allocation11 + $0x3b0] sm:$0xff]
    %v954 = vld [vmem:[#allocation11 + $0x3b8] sm:$0xff]
    %v955 = vld [vmem:[#allocation11 + $0x3c0] sm:$0xff]
    %v956 = vld [vmem:[#allocation11 + $0x3c8] sm:$0xff]
    %v957 = vld [vmem:[#allocation11 + $0x3d0] sm:$0xff]
    %v958 = vld [vmem:[#allocation11 + $0x3d8] sm:$0xff]
    %v959 = vld [vmem:[#allocation11 + $0x3e0] sm:$0xff]
    %v960 = vld [vmem:[#allocation11 + $0x3e8] sm:$0xff]
    %v961 = vld [vmem:[#allocation11 + $0x3f0] sm:$0xff]
    %v962 = vld [vmem:[#allocation11 + $0x3f8] sm:$0xff]
    %v964 = vperm.slane %v830, 0
    %v965 = vperm.slane %v830, 1
    %v966 = vperm.slane %v830, 2
    %v967 = vperm.slane %v830, 3
    %v1100 = vunpack.c.l.b16 %v835
    %v1101 = vunpack.c.h.b16 %v835
    %v1102 = vunpack.c.l.b16 %v836
    %v1103 = vunpack.c.h.b16 %v836
    %v1104 = vunpack.c.l.b16 %v837
    %v1105 = vunpack.c.h.b16 %v837
    %v1106 = vunpack.c.l.b16 %v838
    %v1107 = vunpack.c.h.b16 %v838
    %v1108 = vunpack.c.l.b16 %v839
    %v1109 = vunpack.c.h.b16 %v839
    %v1110 = vunpack.c.l.b16 %v840
    %v1111 = vunpack.c.h.b16 %v840
    %v1112 = vunpack.c.l.b16 %v841
    %v1113 = vunpack.c.h.b16 %v841
    %v1114 = vunpack.c.l.b16 %v842
    %v1115 = vunpack.c.h.b16 %v842
    %v1116 = vunpack.c.l.b16 %v843
    %v1117 = vunpack.c.h.b16 %v843
    %v1118 = vunpack.c.l.b16 %v844
    %v1119 = vunpack.c.h.b16 %v844
    %v1120 = vunpack.c.l.b16 %v845
    %v1121 = vunpack.c.h.b16 %v845
    %v1122 = vunpack.c.l.b16 %v846
    %v1123 = vunpack.c.h.b16 %v846
    %v1124 = vunpack.c.l.b16 %v847
    %v1125 = vunpack.c.h.b16 %v847
    %v1126 = vunpack.c.l.b16 %v848
    %v1127 = vunpack.c.h.b16 %v848
    %v1128 = vunpack.c.l.b16 %v849
    %v1129 = vunpack.c.h.b16 %v849
    %v1130 = vunpack.c.l.b16 %v850
    %v1131 = vunpack.c.h.b16 %v850
    %v1132 = vunpack.c.l.b16 %v851
    %v1133 = vunpack.c.h.b16 %v851
    %v1134 = vunpack.c.l.b16 %v852
    %v1135 = vunpack.c.h.b16 %v852
    %v1136 = vunpack.c.l.b16 %v853
    %v1137 = vunpack.c.h.b16 %v853
    %v1138 = vunpack.c.l.b16 %v854
    %v1139 = vunpack.c.h.b16 %v854
    %v1140 = vunpack.c.l.b16 %v855
    %v1141 = vunpack.c.h.b16 %v855
    %v1142 = vunpack.c.l.b16 %v856
    %v1143 = vunpack.c.h.b16 %v856
    %v1144 = vunpack.c.l.b16 %v857
    %v1145 = vunpack.c.h.b16 %v857
    %v1146 = vunpack.c.l.b16 %v858
    %v1147 = vunpack.c.h.b16 %v858
    %v1148 = vunpack.c.l.b16 %v859
    %v1149 = vunpack.c.h.b16 %v859
    %v1150 = vunpack.c.l.b16 %v860
    %v1151 = vunpack.c.h.b16 %v860
    %v1152 = vunpack.c.l.b16 %v861
    %v1153 = vunpack.c.h.b16 %v861
    %v1154 = vunpack.c.l.b16 %v862
    %v1155 = vunpack.c.h.b16 %v862
    %v1156 = vunpack.c.l.b16 %v863
    %v1157 = vunpack.c.h.b16 %v863
    %v1158 = vunpack.c.l.b16 %v864
    %v1159 = vunpack.c.h.b16 %v864
    %v1160 = vunpack.c.l.b16 %v865
    %v1161 = vunpack.c.h.b16 %v865
    %v1162 = vunpack.c.l.b16 %v866
    %v1163 = vunpack.c.h.b16 %v866
    %v1164 = vunpack.c.l.b16 %v867
    %v1165 = vunpack.c.h.b16 %v867
    %v1166 = vunpack.c.l.b16 %v868
    %v1167 = vunpack.c.h.b16 %v868
    %v1168 = vunpack.c.l.b16 %v869
    %v1169 = vunpack.c.h.b16 %v869
    %v1170 = vunpack.c.l.b16 %v870
    %v1171 = vunpack.c.h.b16 %v870
    %v1172 = vunpack.c.l.b16 %v871
    %v1173 = vunpack.c.h.b16 %v871
    %v1174 = vunpack.c.l.b16 %v872
    %v1175 = vunpack.c.h.b16 %v872
    %v1176 = vunpack.c.l.b16 %v873
    %v1177 = vunpack.c.h.b16 %v873
    %v1178 = vunpack.c.l.b16 %v874
    %v1179 = vunpack.c.h.b16 %v874
    %v1180 = vunpack.c.l.b16 %v875
    %v1181 = vunpack.c.h.b16 %v875
    %v1182 = vunpack.c.l.b16 %v876
    %v1183 = vunpack.c.h.b16 %v876
    %v1184 = vunpack.c.l.b16 %v877
    %v1185 = vunpack.c.h.b16 %v877
    %v1186 = vunpack.c.l.b16 %v878
    %v1187 = vunpack.c.h.b16 %v878
    %v1188 = vunpack.c.l.b16 %v879
    %v1189 = vunpack.c.h.b16 %v879
    %v1190 = vunpack.c.l.b16 %v880
    %v1191 = vunpack.c.h.b16 %v880
    %v1192 = vunpack.c.l.b16 %v881
    %v1193 = vunpack.c.h.b16 %v881
    %v1194 = vunpack.c.l.b16 %v882
    %v1195 = vunpack.c.h.b16 %v882
    %v1196 = vunpack.c.l.b16 %v883
    %v1197 = vunpack.c.h.b16 %v883
    %v1198 = vunpack.c.l.b16 %v884
    %v1199 = vunpack.c.h.b16 %v884
    %v1200 = vunpack.c.l.b16 %v885
    %v1201 = vunpack.c.h.b16 %v885
    %v1202 = vunpack.c.l.b16 %v886
    %v1203 = vunpack.c.h.b16 %v886
    %v1204 = vunpack.c.l.b16 %v887
    %v1205 = vunpack.c.h.b16 %v887
    %v1206 = vunpack.c.l.b16 %v888
    %v1207 = vunpack.c.h.b16 %v888
    %v1208 = vunpack.c.l.b16 %v889
    %v1209 = vunpack.c.h.b16 %v889
    %v1210 = vunpack.c.l.b16 %v890
    %v1211 = vunpack.c.h.b16 %v890
    %v1212 = vunpack.c.l.b16 %v891
    %v1213 = vunpack.c.h.b16 %v891
    %v1214 = vunpack.c.l.b16 %v892
    %v1215 = vunpack.c.h.b16 %v892
    %v1216 = vunpack.c.l.b16 %v893
    %v1217 = vunpack.c.h.b16 %v893
    %v1218 = vunpack.c.l.b16 %v894
    %v1219 = vunpack.c.h.b16 %v894
    %v1220 = vunpack.c.l.b16 %v895
    %v1221 = vunpack.c.h.b16 %v895
    %v1222 = vunpack.c.l.b16 %v896
    %v1223 = vunpack.c.h.b16 %v896
    %v1224 = vunpack.c.l.b16 %v897
    %v1225 = vunpack.c.h.b16 %v897
    %v1226 = vunpack.c.l.b16 %v898
    %v1227 = vunpack.c.h.b16 %v898
    %v1228 = vunpack.c.l.b16 %v899
    %v1229 = vunpack.c.h.b16 %v899
    %v1230 = vunpack.c.l.b16 %v900
    %v1231 = vunpack.c.h.b16 %v900
    %v1232 = vunpack.c.l.b16 %v901
    %v1233 = vunpack.c.h.b16 %v901
    %v1234 = vunpack.c.l.b16 %v902
    %v1235 = vunpack.c.h.b16 %v902
    %v1236 = vunpack.c.l.b16 %v903
    %v1237 = vunpack.c.h.b16 %v903
    %v1238 = vunpack.c.l.b16 %v904
    %v1239 = vunpack.c.h.b16 %v904
    %v1240 = vunpack.c.l.b16 %v905
    %v1241 = vunpack.c.h.b16 %v905
    %v1242 = vunpack.c.l.b16 %v906
    %v1243 = vunpack.c.h.b16 %v906
    %v1244 = vunpack.c.l.b16 %v907
    %v1245 = vunpack.c.h.b16 %v907
    %v1246 = vunpack.c.l.b16 %v908
    %v1247 = vunpack.c.h.b16 %v908
    %v1248 = vunpack.c.l.b16 %v909
    %v1249 = vunpack.c.h.b16 %v909
    %v1250 = vunpack.c.l.b16 %v910
    %v1251 = vunpack.c.h.b16 %v910
    %v1252 = vunpack.c.l.b16 %v911
    %v1253 = vunpack.c.h.b16 %v911
    %v1254 = vunpack.c.l.b16 %v912
    %v1255 = vunpack.c.h.b16 %v912
    %v1256 = vunpack.c.l.b16 %v913
    %v1257 = vunpack.c.h.b16 %v913
    %v1258 = vunpack.c.l.b16 %v914
    %v1259 = vunpack.c.h.b16 %v914
    %v1260 = vunpack.c.l.b16 %v915
    %v1261 = vunpack.c.h.b16 %v915
    %v1262 = vunpack.c.l.b16 %v916
    %v1263 = vunpack.c.h.b16 %v916
    %v1264 = vunpack.c.l.b16 %v917
    %v1265 = vunpack.c.h.b16 %v917
    %v1266 = vunpack.c.l.b16 %v918
    %v1267 = vunpack.c.h.b16 %v918
    %v1268 = vunpack.c.l.b16 %v919
    %v1269 = vunpack.c.h.b16 %v919
    %v1270 = vunpack.c.l.b16 %v920
    %v1271 = vunpack.c.h.b16 %v920
    %v1272 = vunpack.c.l.b16 %v921
    %v1273 = vunpack.c.h.b16 %v921
    %v1274 = vunpack.c.l.b16 %v922
    %v1275 = vunpack.c.h.b16 %v922
    %v1276 = vunpack.c.l.b16 %v923
    %v1277 = vunpack.c.h.b16 %v923
    %v1278 = vunpack.c.l.b16 %v924
    %v1279 = vunpack.c.h.b16 %v924
    %v1280 = vunpack.c.l.b16 %v925
    %v1281 = vunpack.c.h.b16 %v925
    %v1282 = vunpack.c.l.b16 %v926
    %v1283 = vunpack.c.h.b16 %v926
    %v1284 = vunpack.c.l.b16 %v927
    %v1285 = vunpack.c.h.b16 %v927
    %v1286 = vunpack.c.l.b16 %v928
    %v1287 = vunpack.c.h.b16 %v928
    %v1288 = vunpack.c.l.b16 %v929
    %v1289 = vunpack.c.h.b16 %v929
    %v1290 = vunpack.c.l.b16 %v930
    %v1291 = vunpack.c.h.b16 %v930
    %v1292 = vunpack.c.l.b16 %v931
    %v1293 = vunpack.c.h.b16 %v931
    %v1294 = vunpack.c.l.b16 %v932
    %v1295 = vunpack.c.h.b16 %v932
    %v1296 = vunpack.c.l.b16 %v933
    %v1297 = vunpack.c.h.b16 %v933
    %v1298 = vunpack.c.l.b16 %v934
    %v1299 = vunpack.c.h.b16 %v934
    %v1300 = vunpack.c.l.b16 %v935
    %v1301 = vunpack.c.h.b16 %v935
    %v1302 = vunpack.c.l.b16 %v936
    %v1303 = vunpack.c.h.b16 %v936
    %v1304 = vunpack.c.l.b16 %v937
    %v1305 = vunpack.c.h.b16 %v937
    %v1306 = vunpack.c.l.b16 %v938
    %v1307 = vunpack.c.h.b16 %v938
    %v1308 = vunpack.c.l.b16 %v939
    %v1309 = vunpack.c.h.b16 %v939
    %v1310 = vunpack.c.l.b16 %v940
    %v1311 = vunpack.c.h.b16 %v940
    %v1312 = vunpack.c.l.b16 %v941
    %v1313 = vunpack.c.h.b16 %v941
    %v1314 = vunpack.c.l.b16 %v942
    %v1315 = vunpack.c.h.b16 %v942
    %v1316 = vunpack.c.l.b16 %v943
    %v1317 = vunpack.c.h.b16 %v943
    %v1318 = vunpack.c.l.b16 %v944
    %v1319 = vunpack.c.h.b16 %v944
    %v1320 = vunpack.c.l.b16 %v945
    %v1321 = vunpack.c.h.b16 %v945
    %v1322 = vunpack.c.l.b16 %v946
    %v1323 = vunpack.c.h.b16 %v946
    %v1324 = vunpack.c.l.b16 %v947
    %v1325 = vunpack.c.h.b16 %v947
    %v1326 = vunpack.c.l.b16 %v948
    %v1327 = vunpack.c.h.b16 %v948
    %v1328 = vunpack.c.l.b16 %v949
    %v1329 = vunpack.c.h.b16 %v949
    %v1330 = vunpack.c.l.b16 %v950
    %v1331 = vunpack.c.h.b16 %v950
    %v1332 = vunpack.c.l.b16 %v951
    %v1333 = vunpack.c.h.b16 %v951
    %v1334 = vunpack.c.l.b16 %v952
    %v1335 = vunpack.c.h.b16 %v952
    %v1336 = vunpack.c.l.b16 %v953
    %v1337 = vunpack.c.h.b16 %v953
    %v1338 = vunpack.c.l.b16 %v954
    %v1339 = vunpack.c.h.b16 %v954
    %v1340 = vunpack.c.l.b16 %v955
    %v1341 = vunpack.c.h.b16 %v955
    %v1342 = vunpack.c.l.b16 %v956
    %v1343 = vunpack.c.h.b16 %v956
    %v1344 = vunpack.c.l.b16 %v957
    %v1345 = vunpack.c.h.b16 %v957
    %v1346 = vunpack.c.l.b16 %v958
    %v1347 = vunpack.c.h.b16 %v958
    %v1348 = vunpack.c.l.b16 %v959
    %v1349 = vunpack.c.h.b16 %v959
    %v1350 = vunpack.c.l.b16 %v960
    %v1351 = vunpack.c.h.b16 %v960
    %v1352 = vunpack.c.l.b16 %v961
    %v1353 = vunpack.c.h.b16 %v961
    %v1354 = vunpack.c.l.b16 %v962
    %v1355 = vunpack.c.h.b16 %v962
    %v1356 = vpack.c.b16 %v1104, %v1100
    %v1357 = vpack.c.b16 %v1105, %v1101
    %v1358 = vpack.c.b16 %v1106, %v1102
    %v1359 = vpack.c.b16 %v1107, %v1103
    %v1360 = vpack.c.b16 %v1112, %v1108
    %v1361 = vpack.c.b16 %v1113, %v1109
    %v1362 = vpack.c.b16 %v1114, %v1110
    %v1363 = vpack.c.b16 %v1115, %v1111
    %v1364 = vpack.c.b16 %v1120, %v1116
    %v1365 = vpack.c.b16 %v1121, %v1117
    %v1366 = vpack.c.b16 %v1122, %v1118
    %v1367 = vpack.c.b16 %v1123, %v1119
    %v1368 = vpack.c.b16 %v1128, %v1124
    %v1369 = vpack.c.b16 %v1129, %v1125
    %v1370 = vpack.c.b16 %v1130, %v1126
    %v1371 = vpack.c.b16 %v1131, %v1127
    %v1372 = vpack.c.b16 %v1136, %v1132
    %v1373 = vpack.c.b16 %v1137, %v1133
    %v1374 = vpack.c.b16 %v1138, %v1134
    %v1375 = vpack.c.b16 %v1139, %v1135
    %v1376 = vpack.c.b16 %v1144, %v1140
    %v1377 = vpack.c.b16 %v1145, %v1141
    %v1378 = vpack.c.b16 %v1146, %v1142
    %v1379 = vpack.c.b16 %v1147, %v1143
    %v1380 = vpack.c.b16 %v1152, %v1148
    %v1381 = vpack.c.b16 %v1153, %v1149
    %v1382 = vpack.c.b16 %v1154, %v1150
    %v1383 = vpack.c.b16 %v1155, %v1151
    %v1384 = vpack.c.b16 %v1160, %v1156
    %v1385 = vpack.c.b16 %v1161, %v1157
    %v1386 = vpack.c.b16 %v1162, %v1158
    %v1387 = vpack.c.b16 %v1163, %v1159
    %v1388 = vpack.c.b16 %v1168, %v1164
    %v1389 = vpack.c.b16 %v1169, %v1165
    %v1390 = vpack.c.b16 %v1170, %v1166
    %v1391 = vpack.c.b16 %v1171, %v1167
    %v1392 = vpack.c.b16 %v1176, %v1172
    %v1393 = vpack.c.b16 %v1177, %v1173
    %v1394 = vpack.c.b16 %v1178, %v1174
    %v1395 = vpack.c.b16 %v1179, %v1175
    %v1396 = vpack.c.b16 %v1184, %v1180
    %v1397 = vpack.c.b16 %v1185, %v1181
    %v1398 = vpack.c.b16 %v1186, %v1182
    %v1399 = vpack.c.b16 %v1187, %v1183
    %v1400 = vpack.c.b16 %v1192, %v1188
    %v1401 = vpack.c.b16 %v1193, %v1189
    %v1402 = vpack.c.b16 %v1194, %v1190
    %v1403 = vpack.c.b16 %v1195, %v1191
    %v1404 = vpack.c.b16 %v1200, %v1196
    %v1405 = vpack.c.b16 %v1201, %v1197
    %v1406 = vpack.c.b16 %v1202, %v1198
    %v1407 = vpack.c.b16 %v1203, %v1199
    %v1408 = vpack.c.b16 %v1208, %v1204
    %v1409 = vpack.c.b16 %v1209, %v1205
    %v1410 = vpack.c.b16 %v1210, %v1206
    %v1411 = vpack.c.b16 %v1211, %v1207
    %v1412 = vpack.c.b16 %v1216, %v1212
    %v1413 = vpack.c.b16 %v1217, %v1213
    %v1414 = vpack.c.b16 %v1218, %v1214
    %v1415 = vpack.c.b16 %v1219, %v1215
    %v1416 = vpack.c.b16 %v1224, %v1220
    %v1417 = vpack.c.b16 %v1225, %v1221
    %v1418 = vpack.c.b16 %v1226, %v1222
    %v1419 = vpack.c.b16 %v1227, %v1223
    %v1420 = vpack.c.b16 %v1232, %v1228
    %v1421 = vpack.c.b16 %v1233, %v1229
    %v1422 = vpack.c.b16 %v1234, %v1230
    %v1423 = vpack.c.b16 %v1235, %v1231
    %v1424 = vpack.c.b16 %v1240, %v1236
    %v1425 = vpack.c.b16 %v1241, %v1237
    %v1426 = vpack.c.b16 %v1242, %v1238
    %v1427 = vpack.c.b16 %v1243, %v1239
    %v1428 = vpack.c.b16 %v1248, %v1244
    %v1429 = vpack.c.b16 %v1249, %v1245
    %v1430 = vpack.c.b16 %v1250, %v1246
    %v1431 = vpack.c.b16 %v1251, %v1247
    %v1432 = vpack.c.b16 %v1256, %v1252
    %v1433 = vpack.c.b16 %v1257, %v1253
    %v1434 = vpack.c.b16 %v1258, %v1254
    %v1435 = vpack.c.b16 %v1259, %v1255
    %v1436 = vpack.c.b16 %v1264, %v1260
    %v1437 = vpack.c.b16 %v1265, %v1261
    %v1438 = vpack.c.b16 %v1266, %v1262
    %v1439 = vpack.c.b16 %v1267, %v1263
    %v1440 = vpack.c.b16 %v1272, %v1268
    %v1441 = vpack.c.b16 %v1273, %v1269
    %v1442 = vpack.c.b16 %v1274, %v1270
    %v1443 = vpack.c.b16 %v1275, %v1271
    %v1444 = vpack.c.b16 %v1280, %v1276
    %v1445 = vpack.c.b16 %v1281, %v1277
    %v1446 = vpack.c.b16 %v1282, %v1278
    %v1447 = vpack.c.b16 %v1283, %v1279
    %v1448 = vpack.c.b16 %v1288, %v1284
    %v1449 = vpack.c.b16 %v1289, %v1285
    %v1450 = vpack.c.b16 %v1290, %v1286
    %v1451 = vpack.c.b16 %v1291, %v1287
    %v1452 = vpack.c.b16 %v1296, %v1292
    %v1453 = vpack.c.b16 %v1297, %v1293
    %v1454 = vpack.c.b16 %v1298, %v1294
    %v1455 = vpack.c.b16 %v1299, %v1295
    %v1456 = vpack.c.b16 %v1304, %v1300
    %v1457 = vpack.c.b16 %v1305, %v1301
    %v1458 = vpack.c.b16 %v1306, %v1302
    %v1459 = vpack.c.b16 %v1307, %v1303
    %v1460 = vpack.c.b16 %v1312, %v1308
    %v1461 = vpack.c.b16 %v1313, %v1309
    %v1462 = vpack.c.b16 %v1314, %v1310
    %v1463 = vpack.c.b16 %v1315, %v1311
    %v1464 = vpack.c.b16 %v1320, %v1316
    %v1465 = vpack.c.b16 %v1321, %v1317
    %v1466 = vpack.c.b16 %v1322, %v1318
    %v1467 = vpack.c.b16 %v1323, %v1319
    %v1468 = vpack.c.b16 %v1328, %v1324
    %v1469 = vpack.c.b16 %v1329, %v1325
    %v1470 = vpack.c.b16 %v1330, %v1326
    %v1471 = vpack.c.b16 %v1331, %v1327
    %v1472 = vpack.c.b16 %v1336, %v1332
    %v1473 = vpack.c.b16 %v1337, %v1333
    %v1474 = vpack.c.b16 %v1338, %v1334
    %v1475 = vpack.c.b16 %v1339, %v1335
    %v1476 = vpack.c.b16 %v1344, %v1340
    %v1477 = vpack.c.b16 %v1345, %v1341
    %v1478 = vpack.c.b16 %v1346, %v1342
    %v1479 = vpack.c.b16 %v1347, %v1343
    %v1480 = vpack.c.b16 %v1352, %v1348
    %v1481 = vpack.c.b16 %v1353, %v1349
    %v1482 = vpack.c.b16 %v1354, %v1350
    %v1483 = vpack.c.b16 %v1355, %v1351
    %1612 = vmatpush.bf16.msra.mxu0 %v1384
    %1613 = vmatpush.bf16.msra.mxu0 %v1380
    %1614 = vmatpush.bf16.msra.mxu0 %v1376
    %1615 = vmatpush.bf16.msra.mxu0 %v1372
    %1616 = vmatpush.bf16.msra.mxu0 %v1368
    %1617 = vmatpush.bf16.msra.mxu0 %v1364
    %1618 = vmatpush.bf16.msra.mxu0 %v1360
    %1619 = vmatpush.bf16.msra.mxu0 %v1356
    %1620 = vmatmul.bf16.gmra.mxu0 %v831
    %v1621 = vpop.f32.mrf.mxu0
    %v1622 = vadd.f32 %v964, %v1621
    %v1623 = vpop.f32.mrf.mxu0
    %1624 = vdwg.mxu0
    %1625 = vmatpush.bf16.msra.mxu0 %v1416
    %1626 = vmatpush.bf16.msra.mxu0 %v1412
    %1627 = vmatpush.bf16.msra.mxu0 %v1408
    %1628 = vmatpush.bf16.msra.mxu0 %v1404
    %1629 = vmatpush.bf16.msra.mxu0 %v1400
    %1630 = vmatpush.bf16.msra.mxu0 %v1396
    %1631 = vmatpush.bf16.msra.mxu0 %v1392
    %1632 = vmatpush.bf16.msra.mxu0 %v1388
    %1633 = vmatmul.bf16.gmra.mxu0 %v832
    %v1634 = vpop.f32.mrf.mxu0
    %v1635 = vadd.f32 %v1622, %v1634
    %v1636 = vpop.f32.mrf.mxu0
    %1637 = vdwg.mxu0
    %1638 = vmatpush.bf16.msra.mxu0 %v1448
    %1639 = vmatpush.bf16.msra.mxu0 %v1444
    %1640 = vmatpush.bf16.msra.mxu0 %v1440
    %1641 = vmatpush.bf16.msra.mxu0 %v1436
    %1642 = vmatpush.bf16.msra.mxu0 %v1432
    %1643 = vmatpush.bf16.msra.mxu0 %v1428
    %1644 = vmatpush.bf16.msra.mxu0 %v1424
    %1645 = vmatpush.bf16.msra.mxu0 %v1420
    %1646 = vmatmul.bf16.gmra.mxu0 %v833
    %v1647 = vpop.f32.mrf.mxu0
    %v1648 = vadd.f32 %v1635, %v1647
    %v1649 = vpop.f32.mrf.mxu0
    %1650 = vdwg.mxu0
    %1651 = vmatpush.bf16.msra.mxu0 %v1480
    %1652 = vmatpush.bf16.msra.mxu0 %v1476
    %1653 = vmatpush.bf16.msra.mxu0 %v1472
    %1654 = vmatpush.bf16.msra.mxu0 %v1468
    %1655 = vmatpush.bf16.msra.mxu0 %v1464
    %1656 = vmatpush.bf16.msra.mxu0 %v1460
    %1657 = vmatpush.bf16.msra.mxu0 %v1456
    %1658 = vmatpush.bf16.msra.mxu0 %v1452
    %1659 = vmatmul.bf16.gmra.mxu0 %v834
    %v1660 = vpop.f32.mrf.mxu0
    %v1661 = vadd.f32 %v1648, %v1660
    %v1662 = vpop.f32.mrf.mxu0
    %1663 = vdwg.mxu0
    %1664 = vmatpush.bf16.msra.mxu0 %v1385
    %1665 = vmatpush.bf16.msra.mxu0 %v1381
    %1666 = vmatpush.bf16.msra.mxu0 %v1377
    %1667 = vmatpush.bf16.msra.mxu0 %v1373
    %1668 = vmatpush.bf16.msra.mxu0 %v1369
    %1669 = vmatpush.bf16.msra.mxu0 %v1365
    %1670 = vmatpush.bf16.msra.mxu0 %v1361
    %1671 = vmatpush.bf16.msra.mxu0 %v1357
    %1672 = vmatmul.bf16.gmra.mxu0 %v831
    %v1673 = vpop.f32.mrf.mxu0
    %v1674 = vadd.f32 %v965, %v1673
    %v1675 = vpop.f32.mrf.mxu0
    %1676 = vdwg.mxu0
    %1677 = vmatpush.bf16.msra.mxu0 %v1417
    %1678 = vmatpush.bf16.msra.mxu0 %v1413
    %1679 = vmatpush.bf16.msra.mxu0 %v1409
    %1680 = vmatpush.bf16.msra.mxu0 %v1405
    %1681 = vmatpush.bf16.msra.mxu0 %v1401
    %1682 = vmatpush.bf16.msra.mxu0 %v1397
    %1683 = vmatpush.bf16.msra.mxu0 %v1393
    %1684 = vmatpush.bf16.msra.mxu0 %v1389
    %1685 = vmatmul.bf16.gmra.mxu0 %v832
    %v1686 = vpop.f32.mrf.mxu0
    %v1687 = vadd.f32 %v1674, %v1686
    %v1688 = vpop.f32.mrf.mxu0
    %1689 = vdwg.mxu0
    %1690 = vmatpush.bf16.msra.mxu0 %v1449
    %1691 = vmatpush.bf16.msra.mxu0 %v1445
    %1692 = vmatpush.bf16.msra.mxu0 %v1441
    %1693 = vmatpush.bf16.msra.mxu0 %v1437
    %1694 = vmatpush.bf16.msra.mxu0 %v1433
    %1695 = vmatpush.bf16.msra.mxu0 %v1429
    %1696 = vmatpush.bf16.msra.mxu0 %v1425
    %1697 = vmatpush.bf16.msra.mxu0 %v1421
    %1698 = vmatmul.bf16.gmra.mxu0 %v833
    %v1699 = vpop.f32.mrf.mxu0
    %v1700 = vadd.f32 %v1687, %v1699
    %v1701 = vpop.f32.mrf.mxu0
    %1702 = vdwg.mxu0
    %1703 = vmatpush.bf16.msra.mxu0 %v1481
    %1704 = vmatpush.bf16.msra.mxu0 %v1477
    %1705 = vmatpush.bf16.msra.mxu0 %v1473
    %1706 = vmatpush.bf16.msra.mxu0 %v1469
    %1707 = vmatpush.bf16.msra.mxu0 %v1465
    %1708 = vmatpush.bf16.msra.mxu0 %v1461
    %1709 = vmatpush.bf16.msra.mxu0 %v1457
    %1710 = vmatpush.bf16.msra.mxu0 %v1453
    %1711 = vmatmul.bf16.gmra.mxu0 %v834
    %v1712 = vpop.f32.mrf.mxu0
    %v1713 = vadd.f32 %v1700, %v1712
    %v1714 = vpop.f32.mrf.mxu0
    %1715 = vdwg.mxu0
    %1716 = vmatpush.bf16.msra.mxu0 %v1386
    %1717 = vmatpush.bf16.msra.mxu0 %v1382
    %1718 = vmatpush.bf16.msra.mxu0 %v1378
    %1719 = vmatpush.bf16.msra.mxu0 %v1374
    %1720 = vmatpush.bf16.msra.mxu0 %v1370
    %1721 = vmatpush.bf16.msra.mxu0 %v1366
    %1722 = vmatpush.bf16.msra.mxu0 %v1362
    %1723 = vmatpush.bf16.msra.mxu0 %v1358
    %1724 = vmatmul.bf16.gmra.mxu0 %v831
    %v1725 = vpop.f32.mrf.mxu0
    %v1726 = vadd.f32 %v966, %v1725
    %v1727 = vpop.f32.mrf.mxu0
    %1728 = vdwg.mxu0
    %1729 = vmatpush.bf16.msra.mxu0 %v1418
    %1730 = vmatpush.bf16.msra.mxu0 %v1414
    %1731 = vmatpush.bf16.msra.mxu0 %v1410
    %1732 = vmatpush.bf16.msra.mxu0 %v1406
    %1733 = vmatpush.bf16.msra.mxu0 %v1402
    %1734 = vmatpush.bf16.msra.mxu0 %v1398
    %1735 = vmatpush.bf16.msra.mxu0 %v1394
    %1736 = vmatpush.bf16.msra.mxu0 %v1390
    %1737 = vmatmul.bf16.gmra.mxu0 %v832
    %v1738 = vpop.f32.mrf.mxu0
    %v1739 = vadd.f32 %v1726, %v1738
    %v1740 = vpop.f32.mrf.mxu0
    %1741 = vdwg.mxu0
    %1742 = vmatpush.bf16.msra.mxu0 %v1450
    %1743 = vmatpush.bf16.msra.mxu0 %v1446
    %1744 = vmatpush.bf16.msra.mxu0 %v1442
    %1745 = vmatpush.bf16.msra.mxu0 %v1438
    %1746 = vmatpush.bf16.msra.mxu0 %v1434
    %1747 = vmatpush.bf16.msra.mxu0 %v1430
    %1748 = vmatpush.bf16.msra.mxu0 %v1426
    %1749 = vmatpush.bf16.msra.mxu0 %v1422
    %1750 = vmatmul.bf16.gmra.mxu0 %v833
    %v1751 = vpop.f32.mrf.mxu0
    %v1752 = vadd.f32 %v1739, %v1751
    %v1753 = vpop.f32.mrf.mxu0
    %1754 = vdwg.mxu0
    %1755 = vmatpush.bf16.msra.mxu0 %v1482
    %1756 = vmatpush.bf16.msra.mxu0 %v1478
    %1757 = vmatpush.bf16.msra.mxu0 %v1474
    %1758 = vmatpush.bf16.msra.mxu0 %v1470
    %1759 = vmatpush.bf16.msra.mxu0 %v1466
    %1760 = vmatpush.bf16.msra.mxu0 %v1462
    %1761 = vmatpush.bf16.msra.mxu0 %v1458
    %1762 = vmatpush.bf16.msra.mxu0 %v1454
    %1763 = vmatmul.bf16.gmra.mxu0 %v834
    %v1764 = vpop.f32.mrf.mxu0
    %v1765 = vadd.f32 %v1752, %v1764
    %v1766 = vpop.f32.mrf.mxu0
    %1767 = vdwg.mxu0
    %1768 = vmatpush.bf16.msra.mxu0 %v1387
    %1769 = vmatpush.bf16.msra.mxu0 %v1383
    %1770 = vmatpush.bf16.msra.mxu0 %v1379
    %1771 = vmatpush.bf16.msra.mxu0 %v1375
    %1772 = vmatpush.bf16.msra.mxu0 %v1371
    %1773 = vmatpush.bf16.msra.mxu0 %v1367
    %1774 = vmatpush.bf16.msra.mxu0 %v1363
    %1775 = vmatpush.bf16.msra.mxu0 %v1359
    %1776 = vmatmul.bf16.gmra.mxu0 %v831
    %v1777 = vpop.f32.mrf.mxu0
    %v1778 = vadd.f32 %v967, %v1777
    %v1779 = vpop.f32.mrf.mxu0
    %1780 = vdwg.mxu0
    %1781 = vmatpush.bf16.msra.mxu0 %v1419
    %1782 = vmatpush.bf16.msra.mxu0 %v1415
    %1783 = vmatpush.bf16.msra.mxu0 %v1411
    %1784 = vmatpush.bf16.msra.mxu0 %v1407
    %1785 = vmatpush.bf16.msra.mxu0 %v1403
    %1786 = vmatpush.bf16.msra.mxu0 %v1399
    %1787 = vmatpush.bf16.msra.mxu0 %v1395
    %1788 = vmatpush.bf16.msra.mxu0 %v1391
    %1789 = vmatmul.bf16.gmra.mxu0 %v832
    %v1790 = vpop.f32.mrf.mxu0
    %v1791 = vadd.f32 %v1778, %v1790
    %v1792 = vpop.f32.mrf.mxu0
    %1793 = vdwg.mxu0
    %1794 = vmatpush.bf16.msra.mxu0 %v1451
    %1795 = vmatpush.bf16.msra.mxu0 %v1447
    %1796 = vmatpush.bf16.msra.mxu0 %v1443
    %1797 = vmatpush.bf16.msra.mxu0 %v1439
    %1798 = vmatpush.bf16.msra.mxu0 %v1435
    %1799 = vmatpush.bf16.msra.mxu0 %v1431
    %1800 = vmatpush.bf16.msra.mxu0 %v1427
    %1801 = vmatpush.bf16.msra.mxu0 %v1423
    %1802 = vmatmul.bf16.gmra.mxu0 %v833
    %v1803 = vpop.f32.mrf.mxu0
    %v1804 = vadd.f32 %v1791, %v1803
    %v1805 = vpop.f32.mrf.mxu0
    %1806 = vdwg.mxu0
    %1807 = vmatpush.bf16.msra.mxu0 %v1483
    %1808 = vmatpush.bf16.msra.mxu0 %v1479
    %1809 = vmatpush.bf16.msra.mxu0 %v1475
    %1810 = vmatpush.bf16.msra.mxu0 %v1471
    %1811 = vmatpush.bf16.msra.mxu0 %v1467
    %1812 = vmatpush.bf16.msra.mxu0 %v1463
    %1813 = vmatpush.bf16.msra.mxu0 %v1459
    %1814 = vmatpush.bf16.msra.mxu0 %v1455
    %1815 = vmatmul.bf16.gmra.mxu0 %v834
    %v1816 = vpop.f32.mrf.mxu0
    %v1817 = vadd.f32 %v1804, %v1816
    %v1818 = vpop.f32.mrf.mxu0
    %1819 = vdwg.mxu0
    %v1820 = vxor.u32 %v1661, 2147483648
    %v1821 = vxor.u32 %v1713, 2147483648
    %v1822 = vxor.u32 %v1765, 2147483648
    %v1823 = vxor.u32 %v1817, 2147483648
    %v1824 = vmul.f32 %v1820, 1.442695
    %v1825 = vpow.pop %v1824
    %v1826 = vmul.f32 %v1821, 1.442695
    %v1827 = vpow.pop %v1826
    %v1828 = vmul.f32 %v1822, 1.442695
    %v1829 = vpow.pop %v1828
    %v1830 = vmul.f32 %v1823, 1.442695
    %v1831 = vpow.pop %v1830
    %v1832 = vadd.f32 %v1825, 1.0
    %v1833 = vadd.f32 %v1827, 1.0
    %v1834 = vadd.f32 %v1829, 1.0
    %v1835 = vadd.f32 %v1831, 1.0
    %v1836 = vrcp.pop %v1832
    %v1837 = vmul.f32 %v1832, %v1836
    %v1838 = vsub.f32 1.0, %v1837
    %v1839 = vmul.f32 %v1836, %v1838
    %v1840 = vadd.f32 %v1836, %v1839
    %vm1841 = vweird.f32 %v1832
    %vm1842 = vweird.f32 %v1836
    %vm1843 = vmor %vm1841, %vm1842
    %v1844 = vsel %vm1843, %v1836, %v1840
    %v1845 = vand.u32 2147483647, %v1832
    %vm1846 = vcmp.eq.f32.partialorder %v1845, 8.507059e+37
    %v1847 = vand.u32 %v1832, 2147483648
    %v1848 = vor.u32 1.1754944e-38, %v1847
    %v1849 = vsel %vm1846, %v1848, %v1844
    %v1850 = vmul.f32 1.0, %v1849
    %v1851 = vrcp.pop %v1833
    %v1852 = vmul.f32 %v1833, %v1851
    %v1853 = vsub.f32 1.0, %v1852
    %v1854 = vmul.f32 %v1851, %v1853
    %v1855 = vadd.f32 %v1851, %v1854
    %vm1856 = vweird.f32 %v1833
    %vm1857 = vweird.f32 %v1851
    %vm1858 = vmor %vm1856, %vm1857
    %v1859 = vsel %vm1858, %v1851, %v1855
    %v1860 = vand.u32 2147483647, %v1833
    %vm1861 = vcmp.eq.f32.partialorder %v1860, 8.507059e+37
    %v1862 = vand.u32 %v1833, 2147483648
    %v1863 = vor.u32 1.1754944e-38, %v1862
    %v1864 = vsel %vm1861, %v1863, %v1859
    %v1865 = vmul.f32 1.0, %v1864
    %v1866 = vrcp.pop %v1834
    %v1867 = vmul.f32 %v1834, %v1866
    %v1868 = vsub.f32 1.0, %v1867
    %v1869 = vmul.f32 %v1866, %v1868
    %v1870 = vadd.f32 %v1866, %v1869
    %vm1871 = vweird.f32 %v1834
    %vm1872 = vweird.f32 %v1866
    %vm1873 = vmor %vm1871, %vm1872
    %v1874 = vsel %vm1873, %v1866, %v1870
    %v1875 = vand.u32 2147483647, %v1834
    %vm1876 = vcmp.eq.f32.partialorder %v1875, 8.507059e+37
    %v1877 = vand.u32 %v1834, 2147483648
    %v1878 = vor.u32 1.1754944e-38, %v1877
    %v1879 = vsel %vm1876, %v1878, %v1874
    %v1880 = vmul.f32 1.0, %v1879
    %v1881 = vrcp.pop %v1835
    %v1882 = vmul.f32 %v1835, %v1881
    %v1883 = vsub.f32 1.0, %v1882
    %v1884 = vmul.f32 %v1881, %v1883
    %v1885 = vadd.f32 %v1881, %v1884
    %vm1886 = vweird.f32 %v1835
    %vm1887 = vweird.f32 %v1881
    %vm1888 = vmor %vm1886, %vm1887
    %v1889 = vsel %vm1888, %v1881, %v1885
    %v1890 = vand.u32 2147483647, %v1835
    %vm1891 = vcmp.eq.f32.partialorder %v1890, 8.507059e+37
    %v1892 = vand.u32 %v1835, 2147483648
    %v1893 = vor.u32 1.1754944e-38, %v1892
    %v1894 = vsel %vm1891, %v1893, %v1889
    %v1895 = vmul.f32 1.0, %v1894
    %v1896 = vmul.f32 %v1661, %v1850
    %v1897 = vmul.f32 %v1713, %v1865
    %v1898 = vmul.f32 %v1765, %v1880
    %v1899 = vmul.f32 %v1817, %v1895
    %v1900 = vld [vmem:[#allocation8 + $0x8] sm:$0x1]
    %v1901 = vpack.c.bf16 %v1896, %v1896
    %v1902 = vpack.c.bf16 %v1897, %v1897
    %v1903 = vpack.c.bf16 %v1898, %v1898
    %v1904 = vpack.c.bf16 %v1899, %v1899
    %v1905 = vld [vmem:[#allocation12] sm:$0xf]
    %v1906 = vld [vmem:[#allocation12 + $0x4] sm:$0xf]
    %v1907 = vld [vmem:[#allocation12 + $0x8] sm:$0xf]
    %v1908 = vld [vmem:[#allocation12 + $0xc] sm:$0xf]
    %v1909 = vld [vmem:[#allocation12 + $0x10] sm:$0xf]
    %v1910 = vld [vmem:[#allocation12 + $0x14] sm:$0xf]
    %v1911 = vld [vmem:[#allocation12 + $0x18] sm:$0xf]
    %v1912 = vld [vmem:[#allocation12 + $0x1c] sm:$0xf]
    %v1913 = vld [vmem:[#allocation12 + $0x20] sm:$0xf]
    %v1914 = vld [vmem:[#allocation12 + $0x24] sm:$0xf]
    %v1915 = vld [vmem:[#allocation12 + $0x28] sm:$0xf]
    %v1916 = vld [vmem:[#allocation12 + $0x2c] sm:$0xf]
    %v1917 = vld [vmem:[#allocation12 + $0x30] sm:$0xf]
    %v1918 = vld [vmem:[#allocation12 + $0x34] sm:$0xf]
    %v1919 = vld [vmem:[#allocation12 + $0x38] sm:$0xf]
    %v1920 = vld [vmem:[#allocation12 + $0x3c] sm:$0xf]
    %v1921 = vld [vmem:[#allocation12 + $0x40] sm:$0xf]
    %v1922 = vld [vmem:[#allocation12 + $0x44] sm:$0xf]
    %v1923 = vld [vmem:[#allocation12 + $0x48] sm:$0xf]
    %v1924 = vld [vmem:[#allocation12 + $0x4c] sm:$0xf]
    %v1925 = vld [vmem:[#allocation12 + $0x50] sm:$0xf]
    %v1926 = vld [vmem:[#allocation12 + $0x54] sm:$0xf]
    %v1927 = vld [vmem:[#allocation12 + $0x58] sm:$0xf]
    %v1928 = vld [vmem:[#allocation12 + $0x5c] sm:$0xf]
    %v1929 = vld [vmem:[#allocation12 + $0x60] sm:$0xf]
    %v1930 = vld [vmem:[#allocation12 + $0x64] sm:$0xf]
    %v1931 = vld [vmem:[#allocation12 + $0x68] sm:$0xf]
    %v1932 = vld [vmem:[#allocation12 + $0x6c] sm:$0xf]
    %v1933 = vld [vmem:[#allocation12 + $0x70] sm:$0xf]
    %v1934 = vld [vmem:[#allocation12 + $0x74] sm:$0xf]
    %v1935 = vld [vmem:[#allocation12 + $0x78] sm:$0xf]
    %v1936 = vld [vmem:[#allocation12 + $0x7c] sm:$0xf]
    %v1937 = vld [vmem:[#allocation12 + $0x80] sm:$0xf]
    %v1938 = vld [vmem:[#allocation12 + $0x84] sm:$0xf]
    %v1939 = vld [vmem:[#allocation12 + $0x88] sm:$0xf]
    %v1940 = vld [vmem:[#allocation12 + $0x8c] sm:$0xf]
    %v1941 = vld [vmem:[#allocation12 + $0x90] sm:$0xf]
    %v1942 = vld [vmem:[#allocation12 + $0x94] sm:$0xf]
    %v1943 = vld [vmem:[#allocation12 + $0x98] sm:$0xf]
    %v1944 = vld [vmem:[#allocation12 + $0x9c] sm:$0xf]
    %v1945 = vld [vmem:[#allocation12 + $0xa0] sm:$0xf]
    %v1946 = vld [vmem:[#allocation12 + $0xa4] sm:$0xf]
    %v1947 = vld [vmem:[#allocation12 + $0xa8] sm:$0xf]
    %v1948 = vld [vmem:[#allocation12 + $0xac] sm:$0xf]
    %v1949 = vld [vmem:[#allocation12 + $0xb0] sm:$0xf]
    %v1950 = vld [vmem:[#allocation12 + $0xb4] sm:$0xf]
    %v1951 = vld [vmem:[#allocation12 + $0xb8] sm:$0xf]
    %v1952 = vld [vmem:[#allocation12 + $0xbc] sm:$0xf]
    %v1953 = vld [vmem:[#allocation12 + $0xc0] sm:$0xf]
    %v1954 = vld [vmem:[#allocation12 + $0xc4] sm:$0xf]
    %v1955 = vld [vmem:[#allocation12 + $0xc8] sm:$0xf]
    %v1956 = vld [vmem:[#allocation12 + $0xcc] sm:$0xf]
    %v1957 = vld [vmem:[#allocation12 + $0xd0] sm:$0xf]
    %v1958 = vld [vmem:[#allocation12 + $0xd4] sm:$0xf]
    %v1959 = vld [vmem:[#allocation12 + $0xd8] sm:$0xf]
    %v1960 = vld [vmem:[#allocation12 + $0xdc] sm:$0xf]
    %v1961 = vld [vmem:[#allocation12 + $0xe0] sm:$0xf]
    %v1962 = vld [vmem:[#allocation12 + $0xe4] sm:$0xf]
    %v1963 = vld [vmem:[#allocation12 + $0xe8] sm:$0xf]
    %v1964 = vld [vmem:[#allocation12 + $0xec] sm:$0xf]
    %v1965 = vld [vmem:[#allocation12 + $0xf0] sm:$0xf]
    %v1966 = vld [vmem:[#allocation12 + $0xf4] sm:$0xf]
    %v1967 = vld [vmem:[#allocation12 + $0xf8] sm:$0xf]
    %v1968 = vld [vmem:[#allocation12 + $0xfc] sm:$0xf]
    %v1970 = vperm.slane %v1900, 0
    %v2036 = vunpack.c.l.b16 %v1905
    %v2037 = vunpack.c.l.b16 %v1906
    %v2038 = vunpack.c.l.b16 %v1907
    %v2039 = vunpack.c.l.b16 %v1908
    %v2040 = vunpack.c.l.b16 %v1909
    %v2041 = vunpack.c.l.b16 %v1910
    %v2042 = vunpack.c.l.b16 %v1911
    %v2043 = vunpack.c.l.b16 %v1912
    %v2044 = vunpack.c.l.b16 %v1913
    %v2045 = vunpack.c.l.b16 %v1914
    %v2046 = vunpack.c.l.b16 %v1915
    %v2047 = vunpack.c.l.b16 %v1916
    %v2048 = vunpack.c.l.b16 %v1917
    %v2049 = vunpack.c.l.b16 %v1918
    %v2050 = vunpack.c.l.b16 %v1919
    %v2051 = vunpack.c.l.b16 %v1920
    %v2052 = vunpack.c.l.b16 %v1921
    %v2053 = vunpack.c.l.b16 %v1922
    %v2054 = vunpack.c.l.b16 %v1923
    %v2055 = vunpack.c.l.b16 %v1924
    %v2056 = vunpack.c.l.b16 %v1925
    %v2057 = vunpack.c.l.b16 %v1926
    %v2058 = vunpack.c.l.b16 %v1927
    %v2059 = vunpack.c.l.b16 %v1928
    %v2060 = vunpack.c.l.b16 %v1929
    %v2061 = vunpack.c.l.b16 %v1930
    %v2062 = vunpack.c.l.b16 %v1931
    %v2063 = vunpack.c.l.b16 %v1932
    %v2064 = vunpack.c.l.b16 %v1933
    %v2065 = vunpack.c.l.b16 %v1934
    %v2066 = vunpack.c.l.b16 %v1935
    %v2067 = vunpack.c.l.b16 %v1936
    %v2068 = vunpack.c.l.b16 %v1937
    %v2069 = vunpack.c.l.b16 %v1938
    %v2070 = vunpack.c.l.b16 %v1939
    %v2071 = vunpack.c.l.b16 %v1940
    %v2072 = vunpack.c.l.b16 %v1941
    %v2073 = vunpack.c.l.b16 %v1942
    %v2074 = vunpack.c.l.b16 %v1943
    %v2075 = vunpack.c.l.b16 %v1944
    %v2076 = vunpack.c.l.b16 %v1945
    %v2077 = vunpack.c.l.b16 %v1946
    %v2078 = vunpack.c.l.b16 %v1947
    %v2079 = vunpack.c.l.b16 %v1948
    %v2080 = vunpack.c.l.b16 %v1949
    %v2081 = vunpack.c.l.b16 %v1950
    %v2082 = vunpack.c.l.b16 %v1951
    %v2083 = vunpack.c.l.b16 %v1952
    %v2084 = vunpack.c.l.b16 %v1953
    %v2085 = vunpack.c.l.b16 %v1954
    %v2086 = vunpack.c.l.b16 %v1955
    %v2087 = vunpack.c.l.b16 %v1956
    %v2088 = vunpack.c.l.b16 %v1957
    %v2089 = vunpack.c.l.b16 %v1958
    %v2090 = vunpack.c.l.b16 %v1959
    %v2091 = vunpack.c.l.b16 %v1960
    %v2092 = vunpack.c.l.b16 %v1961
    %v2093 = vunpack.c.l.b16 %v1962
    %v2094 = vunpack.c.l.b16 %v1963
    %v2095 = vunpack.c.l.b16 %v1964
    %v2096 = vunpack.c.l.b16 %v1965
    %v2097 = vunpack.c.l.b16 %v1966
    %v2098 = vunpack.c.l.b16 %v1967
    %v2099 = vunpack.c.l.b16 %v1968
    %v2100 = vpack.c.b16 %v2037, %v2036
    %v2101 = vpack.c.b16 %v2039, %v2038
    %v2102 = vpack.c.b16 %v2041, %v2040
    %v2103 = vpack.c.b16 %v2043, %v2042
    %v2104 = vpack.c.b16 %v2045, %v2044
    %v2105 = vpack.c.b16 %v2047, %v2046
    %v2106 = vpack.c.b16 %v2049, %v2048
    %v2107 = vpack.c.b16 %v2051, %v2050
    %v2108 = vpack.c.b16 %v2053, %v2052
    %v2109 = vpack.c.b16 %v2055, %v2054
    %v2110 = vpack.c.b16 %v2057, %v2056
    %v2111 = vpack.c.b16 %v2059, %v2058
    %v2112 = vpack.c.b16 %v2061, %v2060
    %v2113 = vpack.c.b16 %v2063, %v2062
    %v2114 = vpack.c.b16 %v2065, %v2064
    %v2115 = vpack.c.b16 %v2067, %v2066
    %v2116 = vpack.c.b16 %v2069, %v2068
    %v2117 = vpack.c.b16 %v2071, %v2070
    %v2118 = vpack.c.b16 %v2073, %v2072
    %v2119 = vpack.c.b16 %v2075, %v2074
    %v2120 = vpack.c.b16 %v2077, %v2076
    %v2121 = vpack.c.b16 %v2079, %v2078
    %v2122 = vpack.c.b16 %v2081, %v2080
    %v2123 = vpack.c.b16 %v2083, %v2082
    %v2124 = vpack.c.b16 %v2085, %v2084
    %v2125 = vpack.c.b16 %v2087, %v2086
    %v2126 = vpack.c.b16 %v2089, %v2088
    %v2127 = vpack.c.b16 %v2091, %v2090
    %v2128 = vpack.c.b16 %v2093, %v2092
    %v2129 = vpack.c.b16 %v2095, %v2094
    %v2130 = vpack.c.b16 %v2097, %v2096
    %v2131 = vpack.c.b16 %v2099, %v2098
    %2164 = vmatpush.bf16.msra.mxu0 %v2107
    %2165 = vmatpush.bf16.msra.mxu0 %v2106
    %2166 = vmatpush.bf16.msra.mxu0 %v2105
    %2167 = vmatpush.bf16.msra.mxu0 %v2104
    %2168 = vmatpush.bf16.msra.mxu0 %v2103
    %2169 = vmatpush.bf16.msra.mxu0 %v2102
    %2170 = vmatpush.bf16.msra.mxu0 %v2101
    %2171 = vmatpush.bf16.msra.mxu0 %v2100
    %2172 = vmatmul.bf16.gmra.mxu0 %v1901
    %v2173 = vpop.f32.mrf.mxu0
    %v2174 = vadd.f32 %v1970, %v2173
    %v2175 = vpop.f32.mrf.mxu0
    %2176 = vdwg.mxu0
    %2177 = vmatpush.bf16.msra.mxu0 %v2115
    %2178 = vmatpush.bf16.msra.mxu0 %v2114
    %2179 = vmatpush.bf16.msra.mxu0 %v2113
    %2180 = vmatpush.bf16.msra.mxu0 %v2112
    %2181 = vmatpush.bf16.msra.mxu0 %v2111
    %2182 = vmatpush.bf16.msra.mxu0 %v2110
    %2183 = vmatpush.bf16.msra.mxu0 %v2109
    %2184 = vmatpush.bf16.msra.mxu0 %v2108
    %2185 = vmatmul.bf16.gmra.mxu0 %v1902
    %v2186 = vpop.f32.mrf.mxu0
    %v2187 = vadd.f32 %v2174, %v2186
    %v2188 = vpop.f32.mrf.mxu0
    %2189 = vdwg.mxu0
    %2190 = vmatpush.bf16.msra.mxu0 %v2123
    %2191 = vmatpush.bf16.msra.mxu0 %v2122
    %2192 = vmatpush.bf16.msra.mxu0 %v2121
    %2193 = vmatpush.bf16.msra.mxu0 %v2120
    %2194 = vmatpush.bf16.msra.mxu0 %v2119
    %2195 = vmatpush.bf16.msra.mxu0 %v2118
    %2196 = vmatpush.bf16.msra.mxu0 %v2117
    %2197 = vmatpush.bf16.msra.mxu0 %v2116
    %2198 = vmatmul.bf16.gmra.mxu0 %v1903
    %v2199 = vpop.f32.mrf.mxu0
    %v2200 = vadd.f32 %v2187, %v2199
    %v2201 = vpop.f32.mrf.mxu0
    %2202 = vdwg.mxu0
    %2203 = vmatpush.bf16.msra.mxu0 %v2131
    %2204 = vmatpush.bf16.msra.mxu0 %v2130
    %2205 = vmatpush.bf16.msra.mxu0 %v2129
    %2206 = vmatpush.bf16.msra.mxu0 %v2128
    %2207 = vmatpush.bf16.msra.mxu0 %v2127
    %2208 = vmatpush.bf16.msra.mxu0 %v2126
    %2209 = vmatpush.bf16.msra.mxu0 %v2125
    %2210 = vmatpush.bf16.msra.mxu0 %v2124
    %2211 = vmatmul.bf16.gmra.mxu0 %v1904
    %v2212 = vpop.f32.mrf.mxu0
    %v2213 = vadd.f32 %v2200, %v2212
    %v2214 = vpop.f32.mrf.mxu0
    %2215 = vdwg.mxu0
    %v2216 = vld [vmem:[#allocation8 + $0x9] sm:$0x1]
    %v2217 = vpack.c.bf16 %v2213, %v2213
    %v2218 = vld [vmem:[#allocation14] sm:$0xf]
    %v2219 = vld [vmem:[#allocation14 + $0x4] sm:$0xf]
    %v2220 = vld [vmem:[#allocation14 + $0x8] sm:$0xf]
    %v2221 = vld [vmem:[#allocation14 + $0xc] sm:$0xf]
    %v2222 = vld [vmem:[#allocation14 + $0x10] sm:$0xf]
    %v2223 = vld [vmem:[#allocation14 + $0x14] sm:$0xf]
    %v2224 = vld [vmem:[#allocation14 + $0x18] sm:$0xf]
    %v2225 = vld [vmem:[#allocation14 + $0x1c] sm:$0xf]
    %v2226 = vld [vmem:[#allocation14 + $0x20] sm:$0xf]
    %v2227 = vld [vmem:[#allocation14 + $0x24] sm:$0xf]
    %v2228 = vld [vmem:[#allocation14 + $0x28] sm:$0xf]
    %v2229 = vld [vmem:[#allocation14 + $0x2c] sm:$0xf]
    %v2230 = vld [vmem:[#allocation14 + $0x30] sm:$0xf]
    %v2231 = vld [vmem:[#allocation14 + $0x34] sm:$0xf]
    %v2232 = vld [vmem:[#allocation14 + $0x38] sm:$0xf]
    %v2233 = vld [vmem:[#allocation14 + $0x3c] sm:$0xf]
    %v2235 = vperm.slane %v2216, 0
    %v2253 = vunpack.c.l.b16 %v2218
    %v2254 = vunpack.c.l.b16 %v2219
    %v2255 = vunpack.c.l.b16 %v2220
    %v2256 = vunpack.c.l.b16 %v2221
    %v2257 = vunpack.c.l.b16 %v2222
    %v2258 = vunpack.c.l.b16 %v2223
    %v2259 = vunpack.c.l.b16 %v2224
    %v2260 = vunpack.c.l.b16 %v2225
    %v2261 = vunpack.c.l.b16 %v2226
    %v2262 = vunpack.c.l.b16 %v2227
    %v2263 = vunpack.c.l.b16 %v2228
    %v2264 = vunpack.c.l.b16 %v2229
    %v2265 = vunpack.c.l.b16 %v2230
    %v2266 = vunpack.c.l.b16 %v2231
    %v2267 = vunpack.c.l.b16 %v2232
    %v2268 = vunpack.c.l.b16 %v2233
    %v2269 = vpack.c.b16 %v2254, %v2253
    %v2270 = vpack.c.b16 %v2256, %v2255
    %v2271 = vpack.c.b16 %v2258, %v2257
    %v2272 = vpack.c.b16 %v2260, %v2259
    %v2273 = vpack.c.b16 %v2262, %v2261
    %v2274 = vpack.c.b16 %v2264, %v2263
    %v2275 = vpack.c.b16 %v2266, %v2265
    %v2276 = vpack.c.b16 %v2268, %v2267
    %2285 = vmatpush.bf16.msra.mxu0 %v2276
    %2286 = vmatpush.bf16.msra.mxu0 %v2275
    %2287 = vmatpush.bf16.msra.mxu0 %v2274
    %2288 = vmatpush.bf16.msra.mxu0 %v2273
    %2289 = vmatpush.bf16.msra.mxu0 %v2272
    %2290 = vmatpush.bf16.msra.mxu0 %v2271
    %2291 = vmatpush.bf16.msra.mxu0 %v2270
    %2292 = vmatpush.bf16.msra.mxu0 %v2269
    %2293 = vmatmul.bf16.gmra.mxu0 %v2217
    %v2294 = vpop.f32.mrf.mxu0
    %v2295 = vadd.f32 %v2235, %v2294
    %v2296 = vpop.f32.mrf.mxu0
    %2297 = vdwg.mxu0
    %v2299 = vrot.slane %v2295, 1
    %2301 = vst [vmem:[#allocation2] sm:$0x1] %v2295
    %2302 = vst [vmem:[#allocation2 + $0x1] sm:$0x1] %v2299
    %p2303 = scmp.ge.s32.totalorder %s144, 0
    // Predicated region
    $region58: #{embedding_manager_forward.1} parent=1 // pred_check
      %p2304 = pneg %p2303
    $region59: #{embedding_manager_forward.1} parent=1 // pred_check_branch
      %2306 = sbr.rel (%p2304) target = $region61
    $region60: #{embedding_manager_forward.1} parent=1 // pred_region
      %s2307 = scalar_lea.hbm %s9, %s144
      // Predicated region
      $region62: #{embedding_manager_forward.1} parent=60 // pred_check
        _
      $region63: #{embedding_manager_forward.1} parent=60 // pred_check_branch
        %2309 = sbr.rel target = $region65
      $region64: #{embedding_manager_forward.1} parent=60 // pred_region
        %2310 = sst [smem:[#allocation17]] [#allocation16]
        %2311 = sst [smem:[#allocation18]] [#allocation15]
      $region65: #{embedding_manager_forward.1} parent=60 // pred_fallthru
        _
      %2313 = shalt.err (0)
      %s2315 = sshll.u32 [#allocation2], 4
      %s2316 = int_to_ptr.vmem [resolvable:$true] %s2315
      %s2317 = sshll.u32 %s2307, 4
      %s2318 = int_to_ptr.hbm [resolvable:$true] %s2317
      %2320 = dma.vmem_to_hbm [thread:$0]  %s2316, 16, %s2318, [#allocation3]
    $region61: #{embedding_manager_forward.1} parent=1 // pred_fallthru
      _
    %p2321 = scmp.ge.s32.totalorder %s168, 0
    // Predicated region
    $region66: #{embedding_manager_forward.1} parent=1 // pred_check
      %p2322 = pneg %p2321
    $region67: #{embedding_manager_forward.1} parent=1 // pred_check_branch
      %2324 = sbr.rel (%p2322) target = $region69
    $region68: #{embedding_manager_forward.1} parent=1 // pred_region
      %s2325 = scalar_lea.vmem [#allocation2], 1
      %s2326 = sadd.s32 %s168, 8
      %s2327 = scalar_lea.hbm %s9, %s2326
      %s2328 = scalar_lea.sflag [#allocation3], 1
      // Predicated region
      $region70: #{embedding_manager_forward.1} parent=68 // pred_check
        _
      $region71: #{embedding_manager_forward.1} parent=68 // pred_check_branch
        %2330 = sbr.rel target = $region73
      $region72: #{embedding_manager_forward.1} parent=68 // pred_region
        %2331 = sst [smem:[#allocation17]] [#allocation20]
        %2332 = sst [smem:[#allocation18]] [#allocation19]
      $region73: #{embedding_manager_forward.1} parent=68 // pred_fallthru
        _
      %2334 = shalt.err (0)
      %s2336 = sshll.u32 %s2325, 4
      %s2337 = int_to_ptr.vmem [resolvable:$true] %s2336
      %s2338 = sshll.u32 %s2327, 4
      %s2339 = int_to_ptr.hbm [resolvable:$true] %s2338
      %2341 = dma.vmem_to_hbm [thread:$0]  %s2337, 16, %s2339, %s2328
    $region69: #{embedding_manager_forward.1} parent=1 // pred_fallthru
      _
    // Predicated region
    $region74: #{embedding_manager_forward.1} parent=1 // pred_check
      %p2342 = pneg %p2303
    $region75: #{embedding_manager_forward.1} parent=1 // pred_check_branch
      %2344 = sbr.rel (%p2342) target = $region77
    $region76: #{embedding_manager_forward.1} parent=1 // pred_region
      %s2345 = smul.u32 1, 1
      %s2346 = smul.u32 %s2345, 1
      %s2347 = sshll.u32 %s2346, 4
      %2348 = dma.done [#allocation3], %s2347
    $region77: #{embedding_manager_forward.1} parent=1 // pred_fallthru
      _
    // Predicated region
    $region78: #{embedding_manager_forward.1} parent=1 // pred_check
      %p2349 = pneg %p2321
    $region79: #{embedding_manager_forward.1} parent=1 // pred_check_branch
      %2351 = sbr.rel (%p2349) target = $region81
    $region80: #{embedding_manager_forward.1} parent=1 // pred_region
      %s2352 = scalar_lea.sflag [#allocation3], 1
      %s2353 = smul.u32 1, 1
      %s2354 = smul.u32 %s2353, 1
      %s2355 = sshll.u32 %s2354, 4
      %2356 = dma.done %s2352, %s2355
    $region81: #{embedding_manager_forward.1} parent=1 // pred_fallthru
      _
    %2357 = vsyncpa [#allocation6], 1
    %2358 = vsyncpa [#allocation10], 1
    %2359 = vsyncpa [#allocation13], 1
    %2360 = vsyncpa [#allocation7], 1
  %2361 = vsyncmov [#allocation3]
  %s2362 = vpop.sfrf %2361
  %p2363 = scmp.eq.s32.totalorder %s2362, 0
  %p2364 = pneg %p2363
  %2366 = shalt.err (%p2364)
  %s2367 = scalar_lea.sflag [#allocation3], 1
  %2368 = vsyncmov %s2367
  %s2369 = vpop.sfrf %2368
  %p2370 = scmp.eq.s32.totalorder %s2369, 0
  %p2371 = pneg %p2370
  %2373 = shalt.err (%p2371)

</llo_original>
